<compile_context>
chip_gen: v7x
topology: tpu7x:2x2x1
jax: 0.10.0
libtpu: 0.0.40
codegen_flags: <defaults>
</compile_context>

<pallas_src>
import jax
import jax.numpy as jnp
import numpy as np
from jax.experimental import pallas as pl
from jax.experimental.pallas import tpu as pltpu


# ----------------------------- kernel ---------------------------------------
def _gnn_fused_kernel(W_ref, Kx_ref, P_ref, Ky_ref, b_ref, out_ref):
    # W_ref : (1, Nt, NJ)   Kx_ref: (1, C, NJ)   (j-interleaved, lane-dense)
    # P_ref : (1, Nt, E2)   Ky_ref: (1, C, E2)
    # b_ref : (1, C)        out_ref: (1, Nt, C)
    dn = (((1,), (1,)), ((), ()))          # contract the shared last (lane) dims
    hi = jax.lax.Precision.HIGHEST         # f32 parity; hidden under the W/P DMA
    acc = jax.lax.dot_general(W_ref[0], Kx_ref[0], dn,
                              preferred_element_type=jnp.float32, precision=hi)
    acc = acc + jax.lax.dot_general(P_ref[0], Ky_ref[0], dn,
                                    preferred_element_type=jnp.float32, precision=hi)
    out_ref[0] = (acc + b_ref[...]).astype(out_ref.dtype)


# --------------------------- tiling helpers ----------------------------------
def _sublane_granule(itemsize):
    return {4: 8, 2: 16, 1: 32}.get(int(itemsize), 8)


def _round_up(v, m):
    return -(-v // m) * m


def _vmem_capacity_bytes():
    try:
        cap = getattr(pltpu.get_tpu_info(), "vmem_capacity_bytes", None)
        if cap:
            return int(cap)
    except Exception:
        pass
    return 64 << 20  # conservative default: v7x per-TensorCore VMEM


def _pick_row_tile(N, B, per_row_bytes, fixed_bytes, vmem_limit_bytes, gran):
    """Largest N-row tile (multiple of `gran`) whose double-buffered W+P+out
    tiles fit the VMEM limit after the resident Kx/Ky buffers are accounted."""
    if N <= gran:
        return N
    budget = max(0, vmem_limit_bytes - fixed_bytes) * 9 // 10   # compiler headroom
    nt = max(gran, (budget // (2 * per_row_bytes)) // gran * gran)
    cap = N if N % gran == 0 else max(gran, (N // gran) * gran)  # partial tail tile OK
    nt = min(nt, cap)
    # v7x has 2 TensorCores: expose >= 2 independent grid steps when B == 1.
    if B == 1 and nt >= N:
        nt = min(nt, max(gran, _round_up(-(-N // 2), gran)))
    return nt


# ------------------------------ wrapper --------------------------------------
def gnn_atomic_lg_final_forward(W, x, W_lg, y, P, params, *, n_tile=None):
    """Pallas version of gnn_atomic_lg_final.forward.

    W (B,N,N,J), x (B,N,F0), W_lg (B,E,E,J) [unused], y (B,E,F1), P (B,N,E,2).
    params: 'wx' (C, J*F0), 'bx' (C,), 'wy' (C, 2*F1), 'by' (C,).
    Returns (W, x_output) with x_output of shape (B, N, C).
    """
    del W_lg  # unused by this final layer (matches the PyTorch forward)
    B, N, _, J = W.shape
    E = P.shape[2]
    F0 = x.shape[-1]
    F1 = y.shape[-1]
    C = params["wx"].shape[0]
    NJ, E2 = N * J, 2 * E
    f32 = jnp.float32
    hi = jax.lax.Precision.HIGHEST

    # Big operators stream in native dtype & layout (free row-major reshape,
    # no pre-kernel HBM cast pass).
    W_flat = W.reshape(B, N, NJ)
    P_flat = P.reshape(B, N, E2)

    # Tiny right-hand factors, stored transposed (lane-dense, j-interleaved):
    #   Kx_t[b, c, m*J + j] = sum_f x[b,m,f] * wx[c, j*F0 + f]
    #   Ky_t[b, c, e*2 + j] = sum_f y[b,e,f] * wy[c, j*F1 + f]
    wx3 = params["wx"].astype(f32).reshape(C, J, F0)
    wy3 = params["wy"].astype(f32).reshape(C, 2, F1)
    Kx_t = jnp.einsum("bmf,cjf->bcmj", x.astype(f32), wx3,
                      precision=hi).reshape(B, C, NJ).astype(W_flat.dtype)
    Ky_t = jnp.einsum("bef,cjf->bcej", y.astype(f32), wy3,
                      precision=hi).reshape(B, C, E2).astype(P_flat.dtype)
    bias = (params["bx"].astype(f32) + params["by"].astype(f32)).reshape(1, C)

    # ---- generation-aware VMEM budgeting ------------------------------------
    lane = 128
    w_it, p_it = W_flat.dtype.itemsize, P_flat.dtype.itemsize
    gran = max(_sublane_granule(w_it), _sublane_granule(p_it))

    vmem_cap = _vmem_capacity_bytes()
    vmem_limit = max(32 << 20, min(vmem_cap * 4 // 5, vmem_cap - (12 << 20)))

    # Resident (Nt-independent) buffers: double-buffered Kx_t / Ky_t + slack.
    fixed = (2 * (_round_up(C, _sublane_granule(Kx_t.dtype.itemsize))
                  * _round_up(NJ, lane) * Kx_t.dtype.itemsize
                  + _round_up(C, _sublane_granule(Ky_t.dtype.itemsize))
                  * _round_up(E2, lane) * Ky_t.dtype.itemsize)
             + (2 << 20))
    # Per output row (double-buffered): one W row, one P row, one padded out row.
    per_row = (_round_up(NJ, lane) * w_it + _round_up(E2, lane) * p_it
               + _round_up(C, lane) * 4)

    Nt = n_tile if n_tile is not None else _pick_row_tile(
        N, B, per_row, fixed, vmem_limit, gran)
    grid = (B, pl.cdiv(N, Nt))

    cost = pl.CostEstimate(
        flops=int(2 * B * N * (NJ + E2) * C),
        transcendentals=0,
        bytes_accessed=int(B * N * (NJ * w_it + E2 * p_it)
                           + B * C * (NJ * Kx_t.dtype.itemsize
                                      + E2 * Ky_t.dtype.itemsize)
                           + B * N * C * 4),
    )

    out = pl.pallas_call(
        _gnn_fused_kernel,
        out_shape=jax.ShapeDtypeStruct((B, N, C), f32),
        grid_spec=pltpu.PrefetchScalarGridSpec(
            num_scalar_prefetch=0,
            grid=grid,
            in_specs=[
                pl.BlockSpec((1, Nt, NJ), lambda b, n: (b, n, 0)),  # W rows (streamed)
                pl.BlockSpec((1, C, NJ), lambda b, n: (b, 0, 0)),   # Kx_t (per batch)
                pl.BlockSpec((1, Nt, E2), lambda b, n: (b, n, 0)),  # P rows (streamed)
                pl.BlockSpec((1, C, E2), lambda b, n: (b, 0, 0)),   # Ky_t (per batch)
                pl.BlockSpec((1, C), lambda b, n: (0, 0)),          # fused bias
            ],
            out_specs=pl.BlockSpec((1, Nt, C), lambda b, n: (b, n, 0)),
        ),
        compiler_params=pltpu.CompilerParams(
            dimension_semantics=("parallel", "parallel"),
            vmem_limit_bytes=int(vmem_limit),
        ),
        cost_estimate=cost,
    )(W_flat, Kx_t, P_flat, Ky_t, bias)
    return W, out


# --------------------------- plain-JAX reference ------------------------------
def _reference_forward(W, x, y, P, params):
    hi = jax.lax.Precision.HIGHEST
    J = W.shape[-1]
    x2x = jnp.concatenate(
        [jnp.einsum("bnm,bmf->bnf", W[..., j], x, precision=hi) for j in range(J)],
        axis=-1)
    y2x = jnp.concatenate(
        [jnp.einsum("bne,bef->bnf", P[..., j], y, precision=hi) for j in range(2)],
        axis=-1)
    out = (jnp.einsum("bnk,ck->bnc", x2x, params["wx"], precision=hi) + params["bx"]
           + jnp.einsum("bnk,ck->bnc", y2x, params["wy"], precision=hi) + params["by"])
    return out


if __name__ == "__main__":
    # Module config: feature_maps = [4, 8], J = 2, n_classes = 3
    J, F0, F1, C = 2, 4, 8, 3

    base_key = jax.random.PRNGKey(0)
    kwx, kbx, kwy, kby = jax.random.split(jax.random.fold_in(base_key, 99), 4)
    params = {
        "wx": 0.1 * jax.random.normal(kwx, (C, J * F0), dtype=jnp.float32),
        "bx": 0.1 * jax.random.normal(kbx, (C,), dtype=jnp.float32),
        "wy": 0.1 * jax.random.normal(kwy, (C, 2 * F1), dtype=jnp.float32),
        "by": 0.1 * jax.random.normal(kby, (C,), dtype=jnp.float32),
    }

    def make_case(seed, B, N, E):
        key = jax.random.fold_in(base_key, seed)
        kW, kx, kWlg, ky, kP = jax.random.split(key, 5)
        W = jax.random.normal(kW, (B, N, N, J), dtype=jnp.float32)
        x = jax.random.normal(kx, (B, N, F0), dtype=jnp.float32)
        W_lg = jax.random.normal(kWlg, (B, E, E, J), dtype=jnp.float32)
        y = jax.random.normal(ky, (B, E, F1), dtype=jnp.float32)
        P = jax.random.normal(kP, (B, N, E, 2), dtype=jnp.float32)
        return W, x, W_lg, y, P

    fwd = jax.jit(gnn_atomic_lg_final_forward)

    # Case 1: nominal small problem.  Case 2: B=1 with N not a multiple of the
    # chosen tile -> exercises cdiv edge blocks and the 2-TensorCore split rule.
    for seed, B, N, E in ((0, 2, 16, 32), (1, 1, 40, 24)):
        W, x, W_lg, y, P = make_case(seed, B, N, E)
        W_out, x_output = fwd(W, x, W_lg, y, P, params)
        x_output = jax.block_until_ready(x_output)
        ref = jax.block_until_ready(_reference_forward(W, x, y, P, params))
        assert x_output.shape == (B, N, C), x_output.shape
        np.testing.assert_allclose(np.asarray(x_output), np.asarray(ref),
                                   rtol=1e-4, atol=1e-4)
        np.testing.assert_allclose(np.asarray(W_out), np.asarray(W))

    print("KERNEL_OK")
</pallas_src>

<mosaic_0001>
module attributes {stable_mosaic.version = 11 : i64} {
  func.func @_gnn_fused_kernel(%arg0: i32, %arg1: i32, %arg2: memref<1x16x32xf32, #tpu.memory_space<vmem>>, %arg3: memref<1x3x32xf32, #tpu.memory_space<vmem>>, %arg4: memref<1x16x64xf32, #tpu.memory_space<vmem>>, %arg5: memref<1x3x64xf32, #tpu.memory_space<vmem>>, %arg6: memref<1x3xf32, #tpu.memory_space<vmem>>, %arg7: memref<1x16x3xf32, #tpu.memory_space<vmem>>) attributes {dimension_semantics = [#tpu.dimension_semantics<parallel>, #tpu.dimension_semantics<parallel>], iteration_bounds = array<i64: 2, 1>, scalar_prefetch = 0 : i64, scratch_operands = 0 : i64, tpu.core_type = #tpu.core_type<tc>, window_params = [{transform_indices = @transform_0, window_bounds = array<i64: 1, 16, 32>}, {transform_indices = @transform_1, window_bounds = array<i64: 1, 3, 32>}, {transform_indices = @transform_2, window_bounds = array<i64: 1, 16, 64>}, {transform_indices = @transform_3, window_bounds = array<i64: 1, 3, 64>}, {pipeline_mode = #tpu.pipeline_mode<synchronous>, transform_indices = @transform_4, window_bounds = array<i64: 1, 3>}, {transform_indices = @transform_5, window_bounds = array<i64: 1, 16, 3>}]} {
    %c0 = arith.constant 0 : index
    %c0_0 = arith.constant 0 : index
    %c0_1 = arith.constant 0 : index
    %0 = vector.load %arg2[%c0, %c0_0, %c0_1] : memref<1x16x32xf32, #tpu.memory_space<vmem>>, vector<1x16x32xf32>
    %1 = vector.shape_cast %0 : vector<1x16x32xf32> to vector<16x32xf32>
    %c0_2 = arith.constant 0 : index
    %c0_3 = arith.constant 0 : index
    %c0_4 = arith.constant 0 : index
    %2 = vector.load %arg3[%c0_2, %c0_3, %c0_4] : memref<1x3x32xf32, #tpu.memory_space<vmem>>, vector<1x3x32xf32>
    %3 = vector.shape_cast %2 : vector<1x3x32xf32> to vector<3x32xf32>
    %cst = arith.constant dense<0.000000e+00> : vector<16x3xf32>
    %4 = tpu.matmul %1, %3, %cst {dimension_numbers = #tpu.dot_dimension_numbers<[1], [1], [0], [0], [0, 0, 1, 0], [], []>, precision = #tpu.contract_precision<fp32>} : vector<16x32xf32>, vector<3x32xf32>, vector<16x3xf32> -> vector<16x3xf32>
    %c0_5 = arith.constant 0 : index
    %c0_6 = arith.constant 0 : index
    %c0_7 = arith.constant 0 : index
    %5 = vector.load %arg4[%c0_5, %c0_6, %c0_7] : memref<1x16x64xf32, #tpu.memory_space<vmem>>, vector<1x16x64xf32>
    %6 = vector.shape_cast %5 : vector<1x16x64xf32> to vector<16x64xf32>
    %c0_8 = arith.constant 0 : index
    %c0_9 = arith.constant 0 : index
    %c0_10 = arith.constant 0 : index
    %7 = vector.load %arg5[%c0_8, %c0_9, %c0_10] : memref<1x3x64xf32, #tpu.memory_space<vmem>>, vector<1x3x64xf32>
    %8 = vector.shape_cast %7 : vector<1x3x64xf32> to vector<3x64xf32>
    %cst_11 = arith.constant dense<0.000000e+00> : vector<16x3xf32>
    %9 = tpu.matmul %6, %8, %cst_11 {dimension_numbers = #tpu.dot_dimension_numbers<[1], [1], [0], [0], [0, 0, 1, 0], [], []>, precision = #tpu.contract_precision<fp32>} : vector<16x64xf32>, vector<3x64xf32>, vector<16x3xf32> -> vector<16x3xf32>
    %10 = arith.addf %4, %9 : vector<16x3xf32>
    %c0_12 = arith.constant 0 : index
    %c0_13 = arith.constant 0 : index
    %11 = vector.load %arg6[%c0_12, %c0_13] : memref<1x3xf32, #tpu.memory_space<vmem>>, vector<1x3xf32>
    %12 = vector.broadcast %11 : vector<1x3xf32> to vector<16x3xf32>
    %13 = arith.addf %10, %12 : vector<16x3xf32>
    %c0_14 = arith.constant 0 : index
    %c0_15 = arith.constant 0 : index
    %c0_16 = arith.constant 0 : index
    %14 = vector.load %arg7[%c0_14, %c0_15, %c0_16] : memref<1x16x3xf32, #tpu.memory_space<vmem>>, vector<1x16x3xf32>
    %15 = vector.shape_cast %14 : vector<1x16x3xf32> to vector<16x3xf32>
    %16 = vector.shape_cast %13 : vector<16x3xf32> to vector<1x16x3xf32>
    tpu.vector_store %arg7[%c0_14, %c0_15, %c0_16], %16 {strides = array<i32>} : memref<1x16x3xf32, #tpu.memory_space<vmem>>, vector<1x16x3xf32>,
    return
  }
  func.func @transform_0(%arg0: i32, %arg1: i32) -> (i32, i32, i32) {
    %c0_i32 = arith.constant 0 : i32
    %c0_i32_0 = arith.constant 0 : i32
    return %arg0, %arg1, %c0_i32 : i32, i32, i32
  }
  func.func @transform_1(%arg0: i32, %arg1: i32) -> (i32, i32, i32) {
    %c0_i32 = arith.constant 0 : i32
    %c0_i32_0 = arith.constant 0 : i32
    %c0_i32_1 = arith.constant 0 : i32
    return %arg0, %c0_i32, %c0_i32_0 : i32, i32, i32
  }
  func.func @transform_2(%arg0: i32, %arg1: i32) -> (i32, i32, i32) {
    %c0_i32 = arith.constant 0 : i32
    %c0_i32_0 = arith.constant 0 : i32
    return %arg0, %arg1, %c0_i32 : i32, i32, i32
  }
  func.func @transform_3(%arg0: i32, %arg1: i32) -> (i32, i32, i32) {
    %c0_i32 = arith.constant 0 : i32
    %c0_i32_0 = arith.constant 0 : i32
    %c0_i32_1 = arith.constant 0 : i32
    return %arg0, %c0_i32, %c0_i32_0 : i32, i32, i32
  }
  func.func @transform_4(%arg0: i32, %arg1: i32) -> (i32, i32) {
    %c0_i32 = arith.constant 0 : i32
    %c0_i32_0 = arith.constant 0 : i32
    %c0_i32_1 = arith.constant 0 : i32
    return %c0_i32, %c0_i32_0 : i32, i32
  }
  func.func @transform_5(%arg0: i32, %arg1: i32) -> (i32, i32, i32) {
    %c0_i32 = arith.constant 0 : i32
    %c0_i32_0 = arith.constant 0 : i32
    return %arg0, %arg1, %c0_i32 : i32, i32, i32
  }
}

</mosaic_0001>

<llo_original>
// kernel: gnn_atomic_lg_final_forward.1
$region0: #{gnn_atomic_lg_final_forward.1}
  #allocation0 [shape = 'u32[]', space=smem, size = 0x4, offset = 0x4, fixed_abs, tag = 'smem constant byte address 0x4 - core index']
  #allocation1 [shape = 'u32[144,128]{1,0:T(1,128)}', space=vmem, size = 0x12000, scoped, tag = 'internal scratch']
  %s0 = inlined_call_operand.vmem [shape: f32[2,16,32], index: 0, kind: input, shape index: {}]
  %s1 = inlined_call_operand.vmem [shape: f32[2,3,32], index: 1, kind: input, shape index: {}]
  %s2 = inlined_call_operand.vmem [shape: f32[2,16,64], index: 2, kind: input, shape index: {}]
  %s3 = inlined_call_operand.vmem [shape: f32[2,3,64], index: 3, kind: input, shape index: {}]
  %s4 = inlined_call_operand.vmem [shape: f32[1,3], index: 4, kind: input, shape index: {}]
  %s5 = inlined_call_operand.vmem [shape: f32[2,16,3], index: 5, kind: output, shape index: {}]
  %s6 = sld [smem:[#allocation0]]
  $region53: #{gnn_atomic_lg_final_forward.1} parent=0
    _
  %s8 = ssub.s32 1, %s6
  %s9 = scalar_select 0, %s8, %s6
  loop: start=0, step=1, limit=4
  $region2: #{gnn_atomic_lg_final_forward.1} parent=0 // loop_pre_header
    _
  $region3: #{gnn_atomic_lg_final_forward.1} parent=0 // loop_header
    %s11 = sphi 0, %s15
    %p12 = scmp.ge.s32.totalorder %s11, 4
    %s18 = sphi 0, %s30
    %s19 = sphi 0, %s26
    %s20 = sphi 0, %s18
    %s21 = sphi 0, %s19
    %s22 = sphi 0, %s20
    %s23 = sphi 0, %s21
    %s35 = sphi 0, %s37
    %s38 = sphi 0, %s35
    %s39 = sphi 0, %s38
    %s55 = sphi 0, %s39
    %s61 = sphi 0, %s63
    %s64 = sphi 0, %s61
    %s65 = sphi 0, %s64
    %s81 = sphi 0, %s65
    %s89 = sphi 0, %s91
    %s92 = sphi 0, %s89
    %s93 = sphi 0, %s92
    %s109 = sphi 0, %s93
    %s115 = sphi 0, %s117
    %s118 = sphi 0, %s115
    %s119 = sphi 0, %s118
    %s135 = sphi 0, %s119
    %s139 = sphi 0, %s139
    %s141 = sphi 0, %s139
    %s142 = sphi 0, %s141
    %s156 = sphi 0, %s142
    %s164 = sphi 0, %s166
    %s167 = sphi 0, %s164
    %s168 = sphi 0, %s167
    %s184 = sphi 0, %s168
  $region4: #{gnn_atomic_lg_final_forward.1} parent=0 // loop_header_branch
    %14 = sbr.rel (%p12) target = $region8
  $region5: #{gnn_atomic_lg_final_forward.1} parent=0 // loop_body
    %s16 = ssub.s32 %s11, 1
    %s17 = ssub.s32 %s11, 2
    %s24 = sadd.s32 1, %s19
    %p25 = scmp.ge.s32.totalorder %s24, 1
    %s26 = scalar_select %p25, 0, %s24
    %s27 = sadd.s32 1, %s18
    %s28 = scalar_select %p25, %s27, %s18
    %p29 = scmp.ge.s32.totalorder %s28, 2
    %s30 = scalar_select %p29, 0, %s28
    %s31 = ssub.s32 %s18, %s30
    %s32 = ssub.s32 %s19, %s26
    %s33 = sor.u32 %s31, %s32
    %p34 = scmp.eq.s32.totalorder %s33, 0
    %s36 = sadd.s32 %s35, 1
    %s37 = scalar_select %p34, %s35, %s36
    %p40 = pneg %p34
    %p41 = scmp.eq.s32.totalorder %s11, 1
    %p42 = por %p40, %p41
    %p43 = scmp.ne.s32.totalorder %s35, %s38
    %p44 = scmp.eq.s32.totalorder %s11, 0
    %p45 = por %p43, %p44
    %p46 = scmp.ne.s32.totalorder %s35, %s38
    %p47 = scmp.eq.s32.totalorder %s16, 1
    %p48 = por %p46, %p47
    %p49 = scmp.ne.s32.totalorder %s38, %s39
    %p50 = scmp.eq.s32.totalorder %s16, 0
    %p51 = por %p49, %p50
    %p52 = scmp.ne.s32.totalorder %s38, %s39
    %p53 = scmp.eq.s32.totalorder %s17, 1
    %p54 = por %p52, %p53
    %p56 = scmp.ne.s32.totalorder %s39, %s55
    %p57 = scmp.eq.s32.totalorder %s17, 0
    %p58 = por %p56, %p57
    %s59 = ssub.s32 %s18, %s30
    %p60 = scmp.eq.s32.totalorder %s59, 0
    %s62 = sadd.s32 %s61, 1
    %s63 = scalar_select %p60, %s61, %s62
    %p66 = pneg %p60
    %p67 = scmp.eq.s32.totalorder %s11, 1
    %p68 = por %p66, %p67
    %p69 = scmp.ne.s32.totalorder %s61, %s64
    %p70 = scmp.eq.s32.totalorder %s11, 0
    %p71 = por %p69, %p70
    %p72 = scmp.ne.s32.totalorder %s61, %s64
    %p73 = scmp.eq.s32.totalorder %s16, 1
    %p74 = por %p72, %p73
    %p75 = scmp.ne.s32.totalorder %s64, %s65
    %p76 = scmp.eq.s32.totalorder %s16, 0
    %p77 = por %p75, %p76
    %p78 = scmp.ne.s32.totalorder %s64, %s65
    %p79 = scmp.eq.s32.totalorder %s17, 1
    %p80 = por %p78, %p79
    %p82 = scmp.ne.s32.totalorder %s65, %s81
    %p83 = scmp.eq.s32.totalorder %s17, 0
    %p84 = por %p82, %p83
    %s85 = ssub.s32 %s18, %s30
    %s86 = ssub.s32 %s19, %s26
    %s87 = sor.u32 %s85, %s86
    %p88 = scmp.eq.s32.totalorder %s87, 0
    %s90 = sadd.s32 %s89, 1
    %s91 = scalar_select %p88, %s89, %s90
    %p94 = pneg %p88
    %p95 = scmp.eq.s32.totalorder %s11, 1
    %p96 = por %p94, %p95
    %p97 = scmp.ne.s32.totalorder %s89, %s92
    %p98 = scmp.eq.s32.totalorder %s11, 0
    %p99 = por %p97, %p98
    %p100 = scmp.ne.s32.totalorder %s89, %s92
    %p101 = scmp.eq.s32.totalorder %s16, 1
    %p102 = por %p100, %p101
    %p103 = scmp.ne.s32.totalorder %s92, %s93
    %p104 = scmp.eq.s32.totalorder %s16, 0
    %p105 = por %p103, %p104
    %p106 = scmp.ne.s32.totalorder %s92, %s93
    %p107 = scmp.eq.s32.totalorder %s17, 1
    %p108 = por %p106, %p107
    %p110 = scmp.ne.s32.totalorder %s93, %s109
    %p111 = scmp.eq.s32.totalorder %s17, 0
    %p112 = por %p110, %p111
    %s113 = ssub.s32 %s18, %s30
    %p114 = scmp.eq.s32.totalorder %s113, 0
    %s116 = sadd.s32 %s115, 1
    %s117 = scalar_select %p114, %s115, %s116
    %p120 = pneg %p114
    %p121 = scmp.eq.s32.totalorder %s11, 1
    %p122 = por %p120, %p121
    %p123 = scmp.ne.s32.totalorder %s115, %s118
    %p124 = scmp.eq.s32.totalorder %s11, 0
    %p125 = por %p123, %p124
    %p126 = scmp.ne.s32.totalorder %s115, %s118
    %p127 = scmp.eq.s32.totalorder %s16, 1
    %p128 = por %p126, %p127
    %p129 = scmp.ne.s32.totalorder %s118, %s119
    %p130 = scmp.eq.s32.totalorder %s16, 0
    %p131 = por %p129, %p130
    %p132 = scmp.ne.s32.totalorder %s118, %s119
    %p133 = scmp.eq.s32.totalorder %s17, 1
    %p134 = por %p132, %p133
    %p136 = scmp.ne.s32.totalorder %s119, %s135
    %p137 = scmp.eq.s32.totalorder %s17, 0
    %p138 = por %p136, %p137
    %s140 = sadd.s32 %s139, 1
    %p143 = scmp.eq.s32.totalorder %s11, 1
    %p144 = scmp.ne.s32.totalorder %s139, %s141
    %p145 = scmp.eq.s32.totalorder %s11, 0
    %p146 = por %p144, %p145
    %p147 = scmp.ne.s32.totalorder %s139, %s141
    %p148 = scmp.eq.s32.totalorder %s16, 1
    %p149 = por %p147, %p148
    %p150 = scmp.ne.s32.totalorder %s141, %s142
    %p151 = scmp.eq.s32.totalorder %s16, 0
    %p152 = por %p150, %p151
    %p153 = scmp.ne.s32.totalorder %s141, %s142
    %p154 = scmp.eq.s32.totalorder %s17, 1
    %p155 = por %p153, %p154
    %p157 = scmp.ne.s32.totalorder %s142, %s156
    %p158 = scmp.eq.s32.totalorder %s17, 0
    %p159 = por %p157, %p158
    %s160 = ssub.s32 %s18, %s30
    %s161 = ssub.s32 %s19, %s26
    %s162 = sor.u32 %s160, %s161
    %p163 = scmp.eq.s32.totalorder %s162, 0
    %s165 = sadd.s32 %s164, 1
    %s166 = scalar_select %p163, %s164, %s165
    %p169 = pneg %p163
    %p170 = scmp.eq.s32.totalorder %s11, 1
    %p171 = por %p169, %p170
    %p172 = scmp.ne.s32.totalorder %s164, %s167
    %p173 = scmp.eq.s32.totalorder %s11, 0
    %p174 = por %p172, %p173
    %p175 = scmp.ne.s32.totalorder %s164, %s167
    %p176 = scmp.eq.s32.totalorder %s16, 1
    %p177 = por %p175, %p176
    %p178 = scmp.ne.s32.totalorder %s167, %s168
    %p179 = scmp.eq.s32.totalorder %s16, 0
    %p180 = por %p178, %p179
    %p181 = scmp.ne.s32.totalorder %s167, %s168
    %p182 = scmp.eq.s32.totalorder %s17, 1
    %p183 = por %p181, %p182
    %p185 = scmp.ne.s32.totalorder %s168, %s184
    %p186 = scmp.eq.s32.totalorder %s17, 0
    %p187 = por %p185, %p186
    %p188 = scmp.le.s32.totalorder 1, %s11
    %p189 = scmp.lt.s32.totalorder %s11, 3
    %p190 = pnand %p188, %p189
    %p191 = pneg %p190
    // Predicated region
    $region9: #{gnn_atomic_lg_final_forward.1} parent=5 // pred_check
      _
    $region10: #{gnn_atomic_lg_final_forward.1} parent=5 // pred_check_branch
      %193 = sbr.rel (%p190) target = $region12
    $region11: #{gnn_atomic_lg_final_forward.1} parent=5 // pred_region
      %s194 = ssub.s32 %s11, 1
      // Predicated region
      $region13: #{gnn_atomic_lg_final_forward.1} parent=11 // pred_check
        %p195 = pneg %p152
      $region14: #{gnn_atomic_lg_final_forward.1} parent=11 // pred_check_branch
        %197 = sbr.rel (%p195) target = $region16
      $region15: #{gnn_atomic_lg_final_forward.1} parent=11 // pred_region
        _
      $region16: #{gnn_atomic_lg_final_forward.1} parent=11 // pred_fallthru
        _
    $region12: #{gnn_atomic_lg_final_forward.1} parent=5 // pred_fallthru
      _
    %p198 = scmp.lt.s32.totalorder %s11, 2
    // Predicated region
    $region17: #{gnn_atomic_lg_final_forward.1} parent=5 // pred_check
      %p199 = pneg %p198
    $region18: #{gnn_atomic_lg_final_forward.1} parent=5 // pred_check_branch
      %201 = sbr.rel (%p199) target = $region20
    $region19: #{gnn_atomic_lg_final_forward.1} parent=5 // pred_region
      // Predicated region
      $region21: #{gnn_atomic_lg_final_forward.1} parent=19 // pred_check
        %p202 = pneg %p45
      $region22: #{gnn_atomic_lg_final_forward.1} parent=19 // pred_check_branch
        %204 = sbr.rel (%p202) target = $region24
      $region23: #{gnn_atomic_lg_final_forward.1} parent=19 // pred_region
        %s205 = smul.u32 2, %s19
        %p206 = scmp.lt.s32.totalorder %s18, 1
        %s207 = scalar_select %p206, %s18, 1
        %p208 = scmp.lt.s32.totalorder %s205, 1
        %s209 = scalar_select %p208, %s205, 1
        %s210 = smul.addr %s207, 2
        %s211 = sadd.s32 %s209, %s210
        %s212 = smul.addr %s211, 8
        %s213 = scalar_lea.vmem %s0, %s212
        %s214 = smul.u32 2, %s19
      $region24: #{gnn_atomic_lg_final_forward.1} parent=19 // pred_fallthru
        _
      // Predicated region
      $region25: #{gnn_atomic_lg_final_forward.1} parent=19 // pred_check
        %p215 = pneg %p71
      $region26: #{gnn_atomic_lg_final_forward.1} parent=19 // pred_check_branch
        %217 = sbr.rel (%p215) target = $region28
      $region27: #{gnn_atomic_lg_final_forward.1} parent=19 // pred_region
        %p218 = scmp.lt.s32.totalorder %s18, 1
        %s219 = scalar_select %p218, %s18, 1
        %s220 = smul.addr %s219, 4
        %s221 = scalar_lea.vmem %s1, %s220
      $region28: #{gnn_atomic_lg_final_forward.1} parent=19 // pred_fallthru
        _
      // Predicated region
      $region29: #{gnn_atomic_lg_final_forward.1} parent=19 // pred_check
        %p222 = pneg %p99
      $region30: #{gnn_atomic_lg_final_forward.1} parent=19 // pred_check_branch
        %224 = sbr.rel (%p222) target = $region32
      $region31: #{gnn_atomic_lg_final_forward.1} parent=19 // pred_region
        %s225 = smul.u32 2, %s19
        %p226 = scmp.lt.s32.totalorder %s18, 1
        %s227 = scalar_select %p226, %s18, 1
        %p228 = scmp.lt.s32.totalorder %s225, 1
        %s229 = scalar_select %p228, %s225, 1
        %s230 = smul.addr %s227, 2
        %s231 = sadd.s32 %s229, %s230
        %s232 = smul.addr %s231, 8
        %s233 = scalar_lea.vmem %s2, %s232
        %s234 = smul.u32 2, %s19
      $region32: #{gnn_atomic_lg_final_forward.1} parent=19 // pred_fallthru
        _
      // Predicated region
      $region33: #{gnn_atomic_lg_final_forward.1} parent=19 // pred_check
        %p235 = pneg %p125
      $region34: #{gnn_atomic_lg_final_forward.1} parent=19 // pred_check_branch
        %237 = sbr.rel (%p235) target = $region36
      $region35: #{gnn_atomic_lg_final_forward.1} parent=19 // pred_region
        %p238 = scmp.lt.s32.totalorder %s18, 1
        %s239 = scalar_select %p238, %s18, 1
        %s240 = smul.addr %s239, 4
        %s241 = scalar_lea.vmem %s3, %s240
      $region36: #{gnn_atomic_lg_final_forward.1} parent=19 // pred_fallthru
        _
    $region20: #{gnn_atomic_lg_final_forward.1} parent=5 // pred_fallthru
      _
    %p242 = scmp.le.s32.totalorder 1, %s11
    %p243 = scmp.lt.s32.totalorder %s11, 3
    %p244 = pnand %p242, %p243
    %p245 = pneg %p244
    // Predicated region
    $region37: #{gnn_atomic_lg_final_forward.1} parent=5 // pred_check
      _
    $region38: #{gnn_atomic_lg_final_forward.1} parent=5 // pred_check_branch
      %247 = sbr.rel (%p244) target = $region40
    $region39: #{gnn_atomic_lg_final_forward.1} parent=5 // pred_region
      %s248 = ssub.s32 %s11, 1
      %s249 = smul.u32 2, %s21
      %p250 = scmp.lt.s32.totalorder %s20, 1
      %s251 = scalar_select %p250, %s20, 1
      %p252 = scmp.lt.s32.totalorder %s249, 1
      %s253 = scalar_select %p252, %s249, 1
      %s254 = smul.addr %s251, 2
      %s255 = sadd.s32 %s253, %s254
      %s256 = smul.addr %s255, 8
      %s257 = scalar_lea.vmem %s0, %s256
      %p258 = pneg %p51
      %p259 = pneg %p48
      %p260 = scmp.lt.s32.totalorder %s20, 1
      %s261 = scalar_select %p260, %s20, 1
      %s262 = smul.addr %s261, 4
      %s263 = scalar_lea.vmem %s1, %s262
      %p264 = pneg %p77
      %p265 = pneg %p74
      %s266 = smul.u32 2, %s21
      %p267 = scmp.lt.s32.totalorder %s20, 1
      %s268 = scalar_select %p267, %s20, 1
      %p269 = scmp.lt.s32.totalorder %s266, 1
      %s270 = scalar_select %p269, %s266, 1
      %s271 = smul.addr %s268, 2
      %s272 = sadd.s32 %s270, %s271
      %s273 = smul.addr %s272, 8
      %s274 = scalar_lea.vmem %s2, %s273
      %p275 = pneg %p105
      %p276 = pneg %p102
      %p277 = scmp.lt.s32.totalorder %s20, 1
      %s278 = scalar_select %p277, %s20, 1
      %s279 = smul.addr %s278, 4
      %s280 = scalar_lea.vmem %s3, %s279
      %p281 = pneg %p131
      %p282 = pneg %p128
      %p283 = pneg %p152
      %p284 = pneg %p149
      %p285 = pneg %p180
      %p286 = pneg %p177
      %s287 = smul.u32 2, %s21
      %p288 = scmp.lt.s32.totalorder %s20, 1
      %s289 = scalar_select %p288, %s20, 1
      %p290 = scmp.lt.s32.totalorder %s287, 1
      %s291 = scalar_select %p290, %s287, 1
      %s292 = smul.addr %s289, 2
      %s293 = sadd.s32 %s291, %s292
      %s294 = smul.addr %s293, 8
      %s295 = scalar_lea.vmem %s5, %s294
      %s296 = smul.u32 2, %s21
      %p297 = scmp.lt.s32.totalorder %s20, 1
      %s298 = scalar_select %p297, %s20, 1
      %p299 = scmp.lt.s32.totalorder %s296, 1
      %s300 = scalar_select %p299, %s296, 1
      %s301 = smul.addr %s298, 2
      %s302 = sadd.s32 %s300, %s301
      %s303 = smul.addr %s302, 8
      %s304 = scalar_lea.vmem %s0, %s303
      %s305 = smul.u32 2, %s21
      %p306 = scmp.lt.s32.totalorder %s20, 1
      %s307 = scalar_select %p306, %s20, 1
      %s308 = smul.addr %s307, 4
      %s309 = scalar_lea.vmem %s1, %s308
      %s310 = smul.u32 2, %s21
      %p311 = scmp.lt.s32.totalorder %s20, 1
      %s312 = scalar_select %p311, %s20, 1
      %p313 = scmp.lt.s32.totalorder %s310, 1
      %s314 = scalar_select %p313, %s310, 1
      %s315 = smul.addr %s312, 2
      %s316 = sadd.s32 %s314, %s315
      %s317 = smul.addr %s316, 8
      %s318 = scalar_lea.vmem %s2, %s317
      %s319 = smul.u32 2, %s21
      %p320 = scmp.lt.s32.totalorder %s20, 1
      %s321 = scalar_select %p320, %s20, 1
      %s322 = smul.addr %s321, 4
      %s323 = scalar_lea.vmem %s3, %s322
      %s324 = smul.u32 2, %s21
      %p325 = scmp.lt.s32.totalorder %s20, 1
      %s326 = scalar_select %p325, %s20, 1
      %p327 = scmp.lt.s32.totalorder %s324, 1
      %s328 = scalar_select %p327, %s324, 1
      %s329 = smul.addr %s326, 2
      %s330 = sadd.s32 %s328, %s329
      %s331 = smul.addr %s330, 8
      %s332 = scalar_lea.vmem %s5, %s331
      %s333 = smul.u32 2, %s21
      %v334 = vld [vmem:[%s304] sm:$0xff]
      %v335 = vld [vmem:[%s304 + $0x8] sm:$0xff]
      %v336 = vld [vmem:[%s309] sm:$0x7]
      %v337 = vld [vmem:[%s318] sm:$0xff]
      %v338 = vld [vmem:[%s318 + $0x8] sm:$0xff]
      %v339 = vld [vmem:[%s323] sm:$0x7]
      %vm340 = vcmask 523264
      %v342 = vsel %vm340, %v337, 0
      %v345 = vsel %vm340, %v338, 0
      %v348 = vsel %vm340, %v339, 0
      %350 = vmatprep.subr.mxu0 0.0
      %v351 = vand.u32 %v348, 4294901760
      %352 = vmatpush1.xpose.msra.mxu0 %v351
      %353 = vmatprep.subr.mxu0 0.0
      %354 = vmatpush1.xpose.msra.mxu0 0.0
      %355 = vmatprep.subr.mxu0 0.0
      %356 = vmatpush1.xpose.msra.mxu0 0.0
      %357 = vmatprep.subr.mxu0 0.0
      %358 = vmatpush1.xpose.msra.mxu0 0.0
      %359 = vmatprep.subr.mxu0 0.0
      %360 = vmatpush1.xpose.msra.mxu0 0.0
      %361 = vmatprep.subr.mxu0 0.0
      %362 = vmatpush1.xpose.msra.mxu0 0.0
      %363 = vmatprep.subr.mxu0 0.0
      %364 = vmatpush1.xpose.msra.mxu0 0.0
      %365 = vmatprep.subr.mxu0 0.0
      %366 = vmatpush1.xpose.msra.mxu0 0.0
      %367 = vmatprep.subr.mxu0 0.0
      %368 = vmatpush1.xpose.msra.mxu0 0.0
      %369 = vmatprep.subr.mxu0 0.0
      %370 = vmatpush1.xpose.msra.mxu0 0.0
      %371 = vmatprep.subr.mxu0 0.0
      %372 = vmatpush1.xpose.msra.mxu0 0.0
      %373 = vmatprep.subr.mxu0 0.0
      %374 = vmatpush1.xpose.msra.mxu0 0.0
      %375 = vmatprep.subr.mxu0 0.0
      %376 = vmatpush1.xpose.msra.mxu0 0.0
      %377 = vmatprep.subr.mxu0 0.0
      %378 = vmatpush1.xpose.msra.mxu0 0.0
      %379 = vmatprep.subr.mxu0 0.0
      %380 = vmatpush1.xpose.msra.mxu0 0.0
      %381 = vmatprep.subr.mxu0 0.0
      %382 = vmatpush1.xpose.msra.mxu0 0.0
      %383 = vmatprep.subr.mxu0 0.0
      %384 = vmatpush1.xpose.msra.mxu0 0.0
      %385 = vmatprep.subr.mxu0 0.0
      %386 = vmatpush1.xpose.msra.mxu0 0.0
      %387 = vmatprep.subr.mxu0 0.0
      %388 = vmatpush1.xpose.msra.mxu0 0.0
      %389 = vmatprep.subr.mxu0 0.0
      %390 = vmatpush1.xpose.msra.mxu0 0.0
      %391 = vmatprep.subr.mxu0 0.0
      %392 = vmatpush1.xpose.msra.mxu0 0.0
      %393 = vmatprep.subr.mxu0 0.0
      %394 = vmatpush1.xpose.msra.mxu0 0.0
      %395 = vmatprep.subr.mxu0 0.0
      %396 = vmatpush1.xpose.msra.mxu0 0.0
      %397 = vmatprep.subr.mxu0 0.0
      %398 = vmatpush1.xpose.msra.mxu0 0.0
      %399 = vmatprep.subr.mxu0 0.0
      %400 = vmatpush1.xpose.msra.mxu0 0.0
      %401 = vmatprep.subr.mxu0 0.0
      %402 = vmatpush1.xpose.msra.mxu0 0.0
      %403 = vmatprep.subr.mxu0 0.0
      %404 = vmatpush1.xpose.msra.mxu0 0.0
      %405 = vmatprep.subr.mxu0 0.0
      %406 = vmatpush1.xpose.msra.mxu0 0.0
      %407 = vmatprep.subr.mxu0 0.0
      %408 = vmatpush1.xpose.msra.mxu0 0.0
      %409 = vmatprep.subr.mxu0 0.0
      %410 = vmatpush1.xpose.msra.mxu0 0.0
      %411 = vmatprep.subr.mxu0 0.0
      %412 = vmatpush1.xpose.msra.mxu0 0.0
      %413 = vmatprep.subr.mxu0 0.0
      %414 = vmatpush1.xpose.msra.mxu0 0.0
      %415 = vmatprep.mubr.f32.mxu0 0.0
      %v416 = vand.u32 %v342, 4294901760
      %v417 = vsub.f32 %v342, %v416
      %v418 = vand.u32 %v417, 4294901760
      %v419 = vsub.f32 %v417, %v418
      %v420 = vand.u32 %v419, 4294901760
      %421 = vmatmul.mubr.f32.gmra.mrb[0].mxu0 %v420
      %v422 = vpop.f32.mrb[0].mxu0
      %v423 = vadd.f32 0.0, %v422
      %v424 = vpop.f32.mrb[0].mxu0
      %425 = vmatprep.mubr.f32.mxu0 0.0
      %v426 = vand.u32 %v345, 4294901760
      %v427 = vsub.f32 %v345, %v426
      %v428 = vand.u32 %v427, 4294901760
      %v429 = vsub.f32 %v427, %v428
      %v430 = vand.u32 %v429, 4294901760
      %431 = vmatmul.mubr.f32.gmra.mrb[0].mxu0 %v430
      %v432 = vpop.f32.mrb[0].mxu0
      %v433 = vadd.f32 0.0, %v432
      %v434 = vpop.f32.mrb[0].mxu0
      %435 = vdwg.mxu0
      %436 = vmatprep.subr.mxu0 0.0
      %v437 = vand.u32 %v348, 4294901760
      %v438 = vsub.f32 %v348, %v437
      %v439 = vand.u32 %v438, 4294901760
      %v440 = vsub.f32 %v438, %v439
      %v441 = vand.u32 %v440, 4294901760
      %442 = vmatpush1.xpose.msra.mxu0 %v441
      %443 = vmatprep.subr.mxu0 0.0
      %444 = vmatpush1.xpose.msra.mxu0 0.0
      %445 = vmatprep.subr.mxu0 0.0
      %446 = vmatpush1.xpose.msra.mxu0 0.0
      %447 = vmatprep.subr.mxu0 0.0
      %448 = vmatpush1.xpose.msra.mxu0 0.0
      %449 = vmatprep.subr.mxu0 0.0
      %450 = vmatpush1.xpose.msra.mxu0 0.0
      %451 = vmatprep.subr.mxu0 0.0
      %452 = vmatpush1.xpose.msra.mxu0 0.0
      %453 = vmatprep.subr.mxu0 0.0
      %454 = vmatpush1.xpose.msra.mxu0 0.0
      %455 = vmatprep.subr.mxu0 0.0
      %456 = vmatpush1.xpose.msra.mxu0 0.0
      %457 = vmatprep.subr.mxu0 0.0
      %458 = vmatpush1.xpose.msra.mxu0 0.0
      %459 = vmatprep.subr.mxu0 0.0
      %460 = vmatpush1.xpose.msra.mxu0 0.0
      %461 = vmatprep.subr.mxu0 0.0
      %462 = vmatpush1.xpose.msra.mxu0 0.0
      %463 = vmatprep.subr.mxu0 0.0
      %464 = vmatpush1.xpose.msra.mxu0 0.0
      %465 = vmatprep.subr.mxu0 0.0
      %466 = vmatpush1.xpose.msra.mxu0 0.0
      %467 = vmatprep.subr.mxu0 0.0
      %468 = vmatpush1.xpose.msra.mxu0 0.0
      %469 = vmatprep.subr.mxu0 0.0
      %470 = vmatpush1.xpose.msra.mxu0 0.0
      %471 = vmatprep.subr.mxu0 0.0
      %472 = vmatpush1.xpose.msra.mxu0 0.0
      %473 = vmatprep.subr.mxu0 0.0
      %474 = vmatpush1.xpose.msra.mxu0 0.0
      %475 = vmatprep.subr.mxu0 0.0
      %476 = vmatpush1.xpose.msra.mxu0 0.0
      %477 = vmatprep.subr.mxu0 0.0
      %478 = vmatpush1.xpose.msra.mxu0 0.0
      %479 = vmatprep.subr.mxu0 0.0
      %480 = vmatpush1.xpose.msra.mxu0 0.0
      %481 = vmatprep.subr.mxu0 0.0
      %482 = vmatpush1.xpose.msra.mxu0 0.0
      %483 = vmatprep.subr.mxu0 0.0
      %484 = vmatpush1.xpose.msra.mxu0 0.0
      %485 = vmatprep.subr.mxu0 0.0
      %486 = vmatpush1.xpose.msra.mxu0 0.0
      %487 = vmatprep.subr.mxu0 0.0
      %488 = vmatpush1.xpose.msra.mxu0 0.0
      %489 = vmatprep.subr.mxu0 0.0
      %490 = vmatpush1.xpose.msra.mxu0 0.0
      %491 = vmatprep.subr.mxu0 0.0
      %492 = vmatpush1.xpose.msra.mxu0 0.0
      %493 = vmatprep.subr.mxu0 0.0
      %494 = vmatpush1.xpose.msra.mxu0 0.0
      %495 = vmatprep.subr.mxu0 0.0
      %496 = vmatpush1.xpose.msra.mxu0 0.0
      %497 = vmatprep.subr.mxu0 0.0
      %498 = vmatpush1.xpose.msra.mxu0 0.0
      %499 = vmatprep.subr.mxu0 0.0
      %500 = vmatpush1.xpose.msra.mxu0 0.0
      %501 = vmatprep.subr.mxu0 0.0
      %502 = vmatpush1.xpose.msra.mxu0 0.0
      %503 = vmatprep.subr.mxu0 0.0
      %504 = vmatpush1.xpose.msra.mxu0 0.0
      %505 = vmatprep.mubr.f32.mxu0 0.0
      %v506 = vand.u32 %v342, 4294901760
      %507 = vmatmul.mubr.f32.gmra.mrb[0].mxu0 %v506
      %v508 = vpop.f32.mrb[0].mxu0
      %v509 = vadd.f32 %v423, %v508
      %v510 = vpop.f32.mrb[0].mxu0
      %511 = vmatprep.mubr.f32.mxu0 0.0
      %v512 = vand.u32 %v345, 4294901760
      %513 = vmatmul.mubr.f32.gmra.mrb[0].mxu0 %v512
      %v514 = vpop.f32.mrb[0].mxu0
      %v515 = vadd.f32 %v433, %v514
      %v516 = vpop.f32.mrb[0].mxu0
      %517 = vdwg.mxu0
      %518 = vmatprep.subr.mxu0 0.0
      %v519 = vand.u32 %v348, 4294901760
      %v520 = vsub.f32 %v348, %v519
      %521 = vmatpush1.xpose.msra.mxu0 %v520
      %522 = vmatprep.subr.mxu0 0.0
      %523 = vmatpush1.xpose.msra.mxu0 0.0
      %524 = vmatprep.subr.mxu0 0.0
      %525 = vmatpush1.xpose.msra.mxu0 0.0
      %526 = vmatprep.subr.mxu0 0.0
      %527 = vmatpush1.xpose.msra.mxu0 0.0
      %528 = vmatprep.subr.mxu0 0.0
      %529 = vmatpush1.xpose.msra.mxu0 0.0
      %530 = vmatprep.subr.mxu0 0.0
      %531 = vmatpush1.xpose.msra.mxu0 0.0
      %532 = vmatprep.subr.mxu0 0.0
      %533 = vmatpush1.xpose.msra.mxu0 0.0
      %534 = vmatprep.subr.mxu0 0.0
      %535 = vmatpush1.xpose.msra.mxu0 0.0
      %536 = vmatprep.subr.mxu0 0.0
      %537 = vmatpush1.xpose.msra.mxu0 0.0
      %538 = vmatprep.subr.mxu0 0.0
      %539 = vmatpush1.xpose.msra.mxu0 0.0
      %540 = vmatprep.subr.mxu0 0.0
      %541 = vmatpush1.xpose.msra.mxu0 0.0
      %542 = vmatprep.subr.mxu0 0.0
      %543 = vmatpush1.xpose.msra.mxu0 0.0
      %544 = vmatprep.subr.mxu0 0.0
      %545 = vmatpush1.xpose.msra.mxu0 0.0
      %546 = vmatprep.subr.mxu0 0.0
      %547 = vmatpush1.xpose.msra.mxu0 0.0
      %548 = vmatprep.subr.mxu0 0.0
      %549 = vmatpush1.xpose.msra.mxu0 0.0
      %550 = vmatprep.subr.mxu0 0.0
      %551 = vmatpush1.xpose.msra.mxu0 0.0
      %552 = vmatprep.subr.mxu0 0.0
      %553 = vmatpush1.xpose.msra.mxu0 0.0
      %554 = vmatprep.subr.mxu0 0.0
      %555 = vmatpush1.xpose.msra.mxu0 0.0
      %556 = vmatprep.subr.mxu0 0.0
      %557 = vmatpush1.xpose.msra.mxu0 0.0
      %558 = vmatprep.subr.mxu0 0.0
      %559 = vmatpush1.xpose.msra.mxu0 0.0
      %560 = vmatprep.subr.mxu0 0.0
      %561 = vmatpush1.xpose.msra.mxu0 0.0
      %562 = vmatprep.subr.mxu0 0.0
      %563 = vmatpush1.xpose.msra.mxu0 0.0
      %564 = vmatprep.subr.mxu0 0.0
      %565 = vmatpush1.xpose.msra.mxu0 0.0
      %566 = vmatprep.subr.mxu0 0.0
      %567 = vmatpush1.xpose.msra.mxu0 0.0
      %568 = vmatprep.subr.mxu0 0.0
      %569 = vmatpush1.xpose.msra.mxu0 0.0
      %570 = vmatprep.subr.mxu0 0.0
      %571 = vmatpush1.xpose.msra.mxu0 0.0
      %572 = vmatprep.subr.mxu0 0.0
      %573 = vmatpush1.xpose.msra.mxu0 0.0
      %574 = vmatprep.subr.mxu0 0.0
      %575 = vmatpush1.xpose.msra.mxu0 0.0
      %576 = vmatprep.subr.mxu0 0.0
      %577 = vmatpush1.xpose.msra.mxu0 0.0
      %578 = vmatprep.subr.mxu0 0.0
      %579 = vmatpush1.xpose.msra.mxu0 0.0
      %580 = vmatprep.subr.mxu0 0.0
      %581 = vmatpush1.xpose.msra.mxu0 0.0
      %582 = vmatprep.subr.mxu0 0.0
      %583 = vmatpush1.xpose.msra.mxu0 0.0
      %584 = vmatprep.mubr.f32.mxu0 0.0
      %v585 = vand.u32 %v342, 4294901760
      %v586 = vsub.f32 %v342, %v585
      %587 = vmatmul.mubr.f32.gmra.mrb[0].mxu0 %v586
      %v588 = vpop.f32.mrb[0].mxu0
      %v589 = vadd.f32 %v509, %v588
      %v590 = vpop.f32.mrb[0].mxu0
      %591 = vmatprep.mubr.f32.mxu0 0.0
      %v592 = vand.u32 %v345, 4294901760
      %v593 = vsub.f32 %v345, %v592
      %594 = vmatmul.mubr.f32.gmra.mrb[0].mxu0 %v593
      %v595 = vpop.f32.mrb[0].mxu0
      %v596 = vadd.f32 %v515, %v595
      %v597 = vpop.f32.mrb[0].mxu0
      %598 = vdwg.mxu0
      %599 = vmatprep.subr.mxu0 0.0
      %v600 = vand.u32 %v348, 4294901760
      %601 = vmatpush1.xpose.msra.mxu0 %v600
      %602 = vmatprep.subr.mxu0 0.0
      %603 = vmatpush1.xpose.msra.mxu0 0.0
      %604 = vmatprep.subr.mxu0 0.0
      %605 = vmatpush1.xpose.msra.mxu0 0.0
      %606 = vmatprep.subr.mxu0 0.0
      %607 = vmatpush1.xpose.msra.mxu0 0.0
      %608 = vmatprep.subr.mxu0 0.0
      %609 = vmatpush1.xpose.msra.mxu0 0.0
      %610 = vmatprep.subr.mxu0 0.0
      %611 = vmatpush1.xpose.msra.mxu0 0.0
      %612 = vmatprep.subr.mxu0 0.0
      %613 = vmatpush1.xpose.msra.mxu0 0.0
      %614 = vmatprep.subr.mxu0 0.0
      %615 = vmatpush1.xpose.msra.mxu0 0.0
      %616 = vmatprep.subr.mxu0 0.0
      %617 = vmatpush1.xpose.msra.mxu0 0.0
      %618 = vmatprep.subr.mxu0 0.0
      %619 = vmatpush1.xpose.msra.mxu0 0.0
      %620 = vmatprep.subr.mxu0 0.0
      %621 = vmatpush1.xpose.msra.mxu0 0.0
      %622 = vmatprep.subr.mxu0 0.0
      %623 = vmatpush1.xpose.msra.mxu0 0.0
      %624 = vmatprep.subr.mxu0 0.0
      %625 = vmatpush1.xpose.msra.mxu0 0.0
      %626 = vmatprep.subr.mxu0 0.0
      %627 = vmatpush1.xpose.msra.mxu0 0.0
      %628 = vmatprep.subr.mxu0 0.0
      %629 = vmatpush1.xpose.msra.mxu0 0.0
      %630 = vmatprep.subr.mxu0 0.0
      %631 = vmatpush1.xpose.msra.mxu0 0.0
      %632 = vmatprep.subr.mxu0 0.0
      %633 = vmatpush1.xpose.msra.mxu0 0.0
      %634 = vmatprep.subr.mxu0 0.0
      %635 = vmatpush1.xpose.msra.mxu0 0.0
      %636 = vmatprep.subr.mxu0 0.0
      %637 = vmatpush1.xpose.msra.mxu0 0.0
      %638 = vmatprep.subr.mxu0 0.0
      %639 = vmatpush1.xpose.msra.mxu0 0.0
      %640 = vmatprep.subr.mxu0 0.0
      %641 = vmatpush1.xpose.msra.mxu0 0.0
      %642 = vmatprep.subr.mxu0 0.0
      %643 = vmatpush1.xpose.msra.mxu0 0.0
      %644 = vmatprep.subr.mxu0 0.0
      %645 = vmatpush1.xpose.msra.mxu0 0.0
      %646 = vmatprep.subr.mxu0 0.0
      %647 = vmatpush1.xpose.msra.mxu0 0.0
      %648 = vmatprep.subr.mxu0 0.0
      %649 = vmatpush1.xpose.msra.mxu0 0.0
      %650 = vmatprep.subr.mxu0 0.0
      %651 = vmatpush1.xpose.msra.mxu0 0.0
      %652 = vmatprep.subr.mxu0 0.0
      %653 = vmatpush1.xpose.msra.mxu0 0.0
      %654 = vmatprep.subr.mxu0 0.0
      %655 = vmatpush1.xpose.msra.mxu0 0.0
      %656 = vmatprep.subr.mxu0 0.0
      %657 = vmatpush1.xpose.msra.mxu0 0.0
      %658 = vmatprep.subr.mxu0 0.0
      %659 = vmatpush1.xpose.msra.mxu0 0.0
      %660 = vmatprep.subr.mxu0 0.0
      %661 = vmatpush1.xpose.msra.mxu0 0.0
      %662 = vmatprep.subr.mxu0 0.0
      %663 = vmatpush1.xpose.msra.mxu0 0.0
      %664 = vmatprep.mubr.f32.mxu0 0.0
      %v665 = vand.u32 %v342, 4294901760
      %v666 = vsub.f32 %v342, %v665
      %v667 = vand.u32 %v666, 4294901760
      %668 = vmatmul.mubr.f32.gmra.mrb[0].mxu0 %v667
      %v669 = vpop.f32.mrb[0].mxu0
      %v670 = vadd.f32 %v589, %v669
      %v671 = vpop.f32.mrb[0].mxu0
      %672 = vmatprep.mubr.f32.mxu0 0.0
      %v673 = vand.u32 %v345, 4294901760
      %v674 = vsub.f32 %v345, %v673
      %v675 = vand.u32 %v674, 4294901760
      %676 = vmatmul.mubr.f32.gmra.mrb[0].mxu0 %v675
      %v677 = vpop.f32.mrb[0].mxu0
      %v678 = vadd.f32 %v596, %v677
      %v679 = vpop.f32.mrb[0].mxu0
      %680 = vdwg.mxu0
      %681 = vmatprep.subr.mxu0 0.0
      %v682 = vand.u32 %v348, 4294901760
      %v683 = vsub.f32 %v348, %v682
      %v684 = vand.u32 %v683, 4294901760
      %685 = vmatpush1.xpose.msra.mxu0 %v684
      %686 = vmatprep.subr.mxu0 0.0
      %687 = vmatpush1.xpose.msra.mxu0 0.0
      %688 = vmatprep.subr.mxu0 0.0
      %689 = vmatpush1.xpose.msra.mxu0 0.0
      %690 = vmatprep.subr.mxu0 0.0
      %691 = vmatpush1.xpose.msra.mxu0 0.0
      %692 = vmatprep.subr.mxu0 0.0
      %693 = vmatpush1.xpose.msra.mxu0 0.0
      %694 = vmatprep.subr.mxu0 0.0
      %695 = vmatpush1.xpose.msra.mxu0 0.0
      %696 = vmatprep.subr.mxu0 0.0
      %697 = vmatpush1.xpose.msra.mxu0 0.0
      %698 = vmatprep.subr.mxu0 0.0
      %699 = vmatpush1.xpose.msra.mxu0 0.0
      %700 = vmatprep.subr.mxu0 0.0
      %701 = vmatpush1.xpose.msra.mxu0 0.0
      %702 = vmatprep.subr.mxu0 0.0
      %703 = vmatpush1.xpose.msra.mxu0 0.0
      %704 = vmatprep.subr.mxu0 0.0
      %705 = vmatpush1.xpose.msra.mxu0 0.0
      %706 = vmatprep.subr.mxu0 0.0
      %707 = vmatpush1.xpose.msra.mxu0 0.0
      %708 = vmatprep.subr.mxu0 0.0
      %709 = vmatpush1.xpose.msra.mxu0 0.0
      %710 = vmatprep.subr.mxu0 0.0
      %711 = vmatpush1.xpose.msra.mxu0 0.0
      %712 = vmatprep.subr.mxu0 0.0
      %713 = vmatpush1.xpose.msra.mxu0 0.0
      %714 = vmatprep.subr.mxu0 0.0
      %715 = vmatpush1.xpose.msra.mxu0 0.0
      %716 = vmatprep.subr.mxu0 0.0
      %717 = vmatpush1.xpose.msra.mxu0 0.0
      %718 = vmatprep.subr.mxu0 0.0
      %719 = vmatpush1.xpose.msra.mxu0 0.0
      %720 = vmatprep.subr.mxu0 0.0
      %721 = vmatpush1.xpose.msra.mxu0 0.0
      %722 = vmatprep.subr.mxu0 0.0
      %723 = vmatpush1.xpose.msra.mxu0 0.0
      %724 = vmatprep.subr.mxu0 0.0
      %725 = vmatpush1.xpose.msra.mxu0 0.0
      %726 = vmatprep.subr.mxu0 0.0
      %727 = vmatpush1.xpose.msra.mxu0 0.0
      %728 = vmatprep.subr.mxu0 0.0
      %729 = vmatpush1.xpose.msra.mxu0 0.0
      %730 = vmatprep.subr.mxu0 0.0
      %731 = vmatpush1.xpose.msra.mxu0 0.0
      %732 = vmatprep.subr.mxu0 0.0
      %733 = vmatpush1.xpose.msra.mxu0 0.0
      %734 = vmatprep.subr.mxu0 0.0
      %735 = vmatpush1.xpose.msra.mxu0 0.0
      %736 = vmatprep.subr.mxu0 0.0
      %737 = vmatpush1.xpose.msra.mxu0 0.0
      %738 = vmatprep.subr.mxu0 0.0
      %739 = vmatpush1.xpose.msra.mxu0 0.0
      %740 = vmatprep.subr.mxu0 0.0
      %741 = vmatpush1.xpose.msra.mxu0 0.0
      %742 = vmatprep.subr.mxu0 0.0
      %743 = vmatpush1.xpose.msra.mxu0 0.0
      %744 = vmatprep.subr.mxu0 0.0
      %745 = vmatpush1.xpose.msra.mxu0 0.0
      %746 = vmatprep.subr.mxu0 0.0
      %747 = vmatpush1.xpose.msra.mxu0 0.0
      %748 = vmatprep.mubr.f32.mxu0 0.0
      %v749 = vand.u32 %v342, 4294901760
      %750 = vmatmul.mubr.f32.gmra.mrb[0].mxu0 %v749
      %v751 = vpop.f32.mrb[0].mxu0
      %v752 = vadd.f32 %v670, %v751
      %v753 = vpop.f32.mrb[0].mxu0
      %754 = vmatprep.mubr.f32.mxu0 0.0
      %v755 = vand.u32 %v345, 4294901760
      %756 = vmatmul.mubr.f32.gmra.mrb[0].mxu0 %v755
      %v757 = vpop.f32.mrb[0].mxu0
      %v758 = vadd.f32 %v678, %v757
      %v759 = vpop.f32.mrb[0].mxu0
      %760 = vdwg.mxu0
      %761 = vmatprep.subr.mxu0 0.0
      %v762 = vand.u32 %v348, 4294901760
      %763 = vmatpush1.xpose.msra.mxu0 %v762
      %764 = vmatprep.subr.mxu0 0.0
      %765 = vmatpush1.xpose.msra.mxu0 0.0
      %766 = vmatprep.subr.mxu0 0.0
      %767 = vmatpush1.xpose.msra.mxu0 0.0
      %768 = vmatprep.subr.mxu0 0.0
      %769 = vmatpush1.xpose.msra.mxu0 0.0
      %770 = vmatprep.subr.mxu0 0.0
      %771 = vmatpush1.xpose.msra.mxu0 0.0
      %772 = vmatprep.subr.mxu0 0.0
      %773 = vmatpush1.xpose.msra.mxu0 0.0
      %774 = vmatprep.subr.mxu0 0.0
      %775 = vmatpush1.xpose.msra.mxu0 0.0
      %776 = vmatprep.subr.mxu0 0.0
      %777 = vmatpush1.xpose.msra.mxu0 0.0
      %778 = vmatprep.subr.mxu0 0.0
      %779 = vmatpush1.xpose.msra.mxu0 0.0
      %780 = vmatprep.subr.mxu0 0.0
      %781 = vmatpush1.xpose.msra.mxu0 0.0
      %782 = vmatprep.subr.mxu0 0.0
      %783 = vmatpush1.xpose.msra.mxu0 0.0
      %784 = vmatprep.subr.mxu0 0.0
      %785 = vmatpush1.xpose.msra.mxu0 0.0
      %786 = vmatprep.subr.mxu0 0.0
      %787 = vmatpush1.xpose.msra.mxu0 0.0
      %788 = vmatprep.subr.mxu0 0.0
      %789 = vmatpush1.xpose.msra.mxu0 0.0
      %790 = vmatprep.subr.mxu0 0.0
      %791 = vmatpush1.xpose.msra.mxu0 0.0
      %792 = vmatprep.subr.mxu0 0.0
      %793 = vmatpush1.xpose.msra.mxu0 0.0
      %794 = vmatprep.subr.mxu0 0.0
      %795 = vmatpush1.xpose.msra.mxu0 0.0
      %796 = vmatprep.subr.mxu0 0.0
      %797 = vmatpush1.xpose.msra.mxu0 0.0
      %798 = vmatprep.subr.mxu0 0.0
      %799 = vmatpush1.xpose.msra.mxu0 0.0
      %800 = vmatprep.subr.mxu0 0.0
      %801 = vmatpush1.xpose.msra.mxu0 0.0
      %802 = vmatprep.subr.mxu0 0.0
      %803 = vmatpush1.xpose.msra.mxu0 0.0
      %804 = vmatprep.subr.mxu0 0.0
      %805 = vmatpush1.xpose.msra.mxu0 0.0
      %806 = vmatprep.subr.mxu0 0.0
      %807 = vmatpush1.xpose.msra.mxu0 0.0
      %808 = vmatprep.subr.mxu0 0.0
      %809 = vmatpush1.xpose.msra.mxu0 0.0
      %810 = vmatprep.subr.mxu0 0.0
      %811 = vmatpush1.xpose.msra.mxu0 0.0
      %812 = vmatprep.subr.mxu0 0.0
      %813 = vmatpush1.xpose.msra.mxu0 0.0
      %814 = vmatprep.subr.mxu0 0.0
      %815 = vmatpush1.xpose.msra.mxu0 0.0
      %816 = vmatprep.subr.mxu0 0.0
      %817 = vmatpush1.xpose.msra.mxu0 0.0
      %818 = vmatprep.subr.mxu0 0.0
      %819 = vmatpush1.xpose.msra.mxu0 0.0
      %820 = vmatprep.subr.mxu0 0.0
      %821 = vmatpush1.xpose.msra.mxu0 0.0
      %822 = vmatprep.subr.mxu0 0.0
      %823 = vmatpush1.xpose.msra.mxu0 0.0
      %824 = vmatprep.subr.mxu0 0.0
      %825 = vmatpush1.xpose.msra.mxu0 0.0
      %826 = vmatprep.mubr.f32.mxu0 0.0
      %v827 = vand.u32 %v342, 4294901760
      %828 = vmatmul.mubr.f32.gmra.mrb[0].mxu0 %v827
      %v829 = vpop.f32.mrb[0].mxu0
      %v830 = vadd.f32 %v752, %v829
      %v831 = vpop.f32.mrb[0].mxu0
      %832 = vmatprep.mubr.f32.mxu0 0.0
      %v833 = vand.u32 %v345, 4294901760
      %834 = vmatmul.mubr.f32.gmra.mrb[0].mxu0 %v833
      %v835 = vpop.f32.mrb[0].mxu0
      %v836 = vadd.f32 %v758, %v835
      %v837 = vpop.f32.mrb[0].mxu0
      %838 = vdwg.mxu0
      %vm839 = vcmask 261120
      %v841 = vsel %vm839, %v334, 0
      %v844 = vsel %vm839, %v335, 0
      %v847 = vsel %vm839, %v336, 0
      %849 = vmatprep.subr.mxu0 0.0
      %v850 = vand.u32 %v847, 4294901760
      %851 = vmatpush1.xpose.msra.mxu0 %v850
      %852 = vmatprep.subr.mxu0 0.0
      %853 = vmatpush1.xpose.msra.mxu0 0.0
      %854 = vmatprep.subr.mxu0 0.0
      %855 = vmatpush1.xpose.msra.mxu0 0.0
      %856 = vmatprep.subr.mxu0 0.0
      %857 = vmatpush1.xpose.msra.mxu0 0.0
      %858 = vmatprep.subr.mxu0 0.0
      %859 = vmatpush1.xpose.msra.mxu0 0.0
      %860 = vmatprep.subr.mxu0 0.0
      %861 = vmatpush1.xpose.msra.mxu0 0.0
      %862 = vmatprep.subr.mxu0 0.0
      %863 = vmatpush1.xpose.msra.mxu0 0.0
      %864 = vmatprep.subr.mxu0 0.0
      %865 = vmatpush1.xpose.msra.mxu0 0.0
      %866 = vmatprep.subr.mxu0 0.0
      %867 = vmatpush1.xpose.msra.mxu0 0.0
      %868 = vmatprep.subr.mxu0 0.0
      %869 = vmatpush1.xpose.msra.mxu0 0.0
      %870 = vmatprep.subr.mxu0 0.0
      %871 = vmatpush1.xpose.msra.mxu0 0.0
      %872 = vmatprep.subr.mxu0 0.0
      %873 = vmatpush1.xpose.msra.mxu0 0.0
      %874 = vmatprep.subr.mxu0 0.0
      %875 = vmatpush1.xpose.msra.mxu0 0.0
      %876 = vmatprep.subr.mxu0 0.0
      %877 = vmatpush1.xpose.msra.mxu0 0.0
      %878 = vmatprep.subr.mxu0 0.0
      %879 = vmatpush1.xpose.msra.mxu0 0.0
      %880 = vmatprep.subr.mxu0 0.0
      %881 = vmatpush1.xpose.msra.mxu0 0.0
      %882 = vmatprep.subr.mxu0 0.0
      %883 = vmatpush1.xpose.msra.mxu0 0.0
      %884 = vmatprep.subr.mxu0 0.0
      %885 = vmatpush1.xpose.msra.mxu0 0.0
      %886 = vmatprep.subr.mxu0 0.0
      %887 = vmatpush1.xpose.msra.mxu0 0.0
      %888 = vmatprep.subr.mxu0 0.0
      %889 = vmatpush1.xpose.msra.mxu0 0.0
      %890 = vmatprep.subr.mxu0 0.0
      %891 = vmatpush1.xpose.msra.mxu0 0.0
      %892 = vmatprep.subr.mxu0 0.0
      %893 = vmatpush1.xpose.msra.mxu0 0.0
      %894 = vmatprep.subr.mxu0 0.0
      %895 = vmatpush1.xpose.msra.mxu0 0.0
      %896 = vmatprep.subr.mxu0 0.0
      %897 = vmatpush1.xpose.msra.mxu0 0.0
      %898 = vmatprep.subr.mxu0 0.0
      %899 = vmatpush1.xpose.msra.mxu0 0.0
      %900 = vmatprep.subr.mxu0 0.0
      %901 = vmatpush1.xpose.msra.mxu0 0.0
      %902 = vmatprep.subr.mxu0 0.0
      %903 = vmatpush1.xpose.msra.mxu0 0.0
      %904 = vmatprep.subr.mxu0 0.0
      %905 = vmatpush1.xpose.msra.mxu0 0.0
      %906 = vmatprep.subr.mxu0 0.0
      %907 = vmatpush1.xpose.msra.mxu0 0.0
      %908 = vmatprep.subr.mxu0 0.0
      %909 = vmatpush1.xpose.msra.mxu0 0.0
      %910 = vmatprep.subr.mxu0 0.0
      %911 = vmatpush1.xpose.msra.mxu0 0.0
      %912 = vmatprep.subr.mxu0 0.0
      %913 = vmatpush1.xpose.msra.mxu0 0.0
      %914 = vmatprep.mubr.f32.mxu0 0.0
      %v915 = vand.u32 %v841, 4294901760
      %v916 = vsub.f32 %v841, %v915
      %v917 = vand.u32 %v916, 4294901760
      %v918 = vsub.f32 %v916, %v917
      %v919 = vand.u32 %v918, 4294901760
      %920 = vmatmul.mubr.f32.gmra.mrb[0].mxu0 %v919
      %v921 = vpop.f32.mrb[0].mxu0
      %v922 = vadd.f32 %v830, %v921
      %v923 = vpop.f32.mrb[0].mxu0
      %924 = vmatprep.mubr.f32.mxu0 0.0
      %v925 = vand.u32 %v844, 4294901760
      %v926 = vsub.f32 %v844, %v925
      %v927 = vand.u32 %v926, 4294901760
      %v928 = vsub.f32 %v926, %v927
      %v929 = vand.u32 %v928, 4294901760
      %930 = vmatmul.mubr.f32.gmra.mrb[0].mxu0 %v929
      %v931 = vpop.f32.mrb[0].mxu0
      %v932 = vadd.f32 %v836, %v931
      %v933 = vpop.f32.mrb[0].mxu0
      %934 = vdwg.mxu0
      %935 = vmatprep.subr.mxu0 0.0
      %v936 = vand.u32 %v847, 4294901760
      %v937 = vsub.f32 %v847, %v936
      %v938 = vand.u32 %v937, 4294901760
      %v939 = vsub.f32 %v937, %v938
      %v940 = vand.u32 %v939, 4294901760
      %941 = vmatpush1.xpose.msra.mxu0 %v940
      %942 = vmatprep.subr.mxu0 0.0
      %943 = vmatpush1.xpose.msra.mxu0 0.0
      %944 = vmatprep.subr.mxu0 0.0
      %945 = vmatpush1.xpose.msra.mxu0 0.0
      %946 = vmatprep.subr.mxu0 0.0
      %947 = vmatpush1.xpose.msra.mxu0 0.0
      %948 = vmatprep.subr.mxu0 0.0
      %949 = vmatpush1.xpose.msra.mxu0 0.0
      %950 = vmatprep.subr.mxu0 0.0
      %951 = vmatpush1.xpose.msra.mxu0 0.0
      %952 = vmatprep.subr.mxu0 0.0
      %953 = vmatpush1.xpose.msra.mxu0 0.0
      %954 = vmatprep.subr.mxu0 0.0
      %955 = vmatpush1.xpose.msra.mxu0 0.0
      %956 = vmatprep.subr.mxu0 0.0
      %957 = vmatpush1.xpose.msra.mxu0 0.0
      %958 = vmatprep.subr.mxu0 0.0
      %959 = vmatpush1.xpose.msra.mxu0 0.0
      %960 = vmatprep.subr.mxu0 0.0
      %961 = vmatpush1.xpose.msra.mxu0 0.0
      %962 = vmatprep.subr.mxu0 0.0
      %963 = vmatpush1.xpose.msra.mxu0 0.0
      %964 = vmatprep.subr.mxu0 0.0
      %965 = vmatpush1.xpose.msra.mxu0 0.0
      %966 = vmatprep.subr.mxu0 0.0
      %967 = vmatpush1.xpose.msra.mxu0 0.0
      %968 = vmatprep.subr.mxu0 0.0
      %969 = vmatpush1.xpose.msra.mxu0 0.0
      %970 = vmatprep.subr.mxu0 0.0
      %971 = vmatpush1.xpose.msra.mxu0 0.0
      %972 = vmatprep.subr.mxu0 0.0
      %973 = vmatpush1.xpose.msra.mxu0 0.0
      %974 = vmatprep.subr.mxu0 0.0
      %975 = vmatpush1.xpose.msra.mxu0 0.0
      %976 = vmatprep.subr.mxu0 0.0
      %977 = vmatpush1.xpose.msra.mxu0 0.0
      %978 = vmatprep.subr.mxu0 0.0
      %979 = vmatpush1.xpose.msra.mxu0 0.0
      %980 = vmatprep.subr.mxu0 0.0
      %981 = vmatpush1.xpose.msra.mxu0 0.0
      %982 = vmatprep.subr.mxu0 0.0
      %983 = vmatpush1.xpose.msra.mxu0 0.0
      %984 = vmatprep.subr.mxu0 0.0
      %985 = vmatpush1.xpose.msra.mxu0 0.0
      %986 = vmatprep.subr.mxu0 0.0
      %987 = vmatpush1.xpose.msra.mxu0 0.0
      %988 = vmatprep.subr.mxu0 0.0
      %989 = vmatpush1.xpose.msra.mxu0 0.0
      %990 = vmatprep.subr.mxu0 0.0
      %991 = vmatpush1.xpose.msra.mxu0 0.0
      %992 = vmatprep.subr.mxu0 0.0
      %993 = vmatpush1.xpose.msra.mxu0 0.0
      %994 = vmatprep.subr.mxu0 0.0
      %995 = vmatpush1.xpose.msra.mxu0 0.0
      %996 = vmatprep.subr.mxu0 0.0
      %997 = vmatpush1.xpose.msra.mxu0 0.0
      %998 = vmatprep.subr.mxu0 0.0
      %999 = vmatpush1.xpose.msra.mxu0 0.0
      %1000 = vmatprep.subr.mxu0 0.0
      %1001 = vmatpush1.xpose.msra.mxu0 0.0
      %1002 = vmatprep.subr.mxu0 0.0
      %1003 = vmatpush1.xpose.msra.mxu0 0.0
      %1004 = vmatprep.mubr.f32.mxu0 0.0
      %v1005 = vand.u32 %v841, 4294901760
      %1006 = vmatmul.mubr.f32.gmra.mrb[0].mxu0 %v1005
      %v1007 = vpop.f32.mrb[0].mxu0
      %v1008 = vadd.f32 %v922, %v1007
      %v1009 = vpop.f32.mrb[0].mxu0
      %1010 = vmatprep.mubr.f32.mxu0 0.0
      %v1011 = vand.u32 %v844, 4294901760
      %1012 = vmatmul.mubr.f32.gmra.mrb[0].mxu0 %v1011
      %v1013 = vpop.f32.mrb[0].mxu0
      %v1014 = vadd.f32 %v932, %v1013
      %v1015 = vpop.f32.mrb[0].mxu0
      %1016 = vdwg.mxu0
      %1017 = vmatprep.subr.mxu0 0.0
      %v1018 = vand.u32 %v847, 4294901760
      %v1019 = vsub.f32 %v847, %v1018
      %1020 = vmatpush1.xpose.msra.mxu0 %v1019
      %1021 = vmatprep.subr.mxu0 0.0
      %1022 = vmatpush1.xpose.msra.mxu0 0.0
      %1023 = vmatprep.subr.mxu0 0.0
      %1024 = vmatpush1.xpose.msra.mxu0 0.0
      %1025 = vmatprep.subr.mxu0 0.0
      %1026 = vmatpush1.xpose.msra.mxu0 0.0
      %1027 = vmatprep.subr.mxu0 0.0
      %1028 = vmatpush1.xpose.msra.mxu0 0.0
      %1029 = vmatprep.subr.mxu0 0.0
      %1030 = vmatpush1.xpose.msra.mxu0 0.0
      %1031 = vmatprep.subr.mxu0 0.0
      %1032 = vmatpush1.xpose.msra.mxu0 0.0
      %1033 = vmatprep.subr.mxu0 0.0
      %1034 = vmatpush1.xpose.msra.mxu0 0.0
      %1035 = vmatprep.subr.mxu0 0.0
      %1036 = vmatpush1.xpose.msra.mxu0 0.0
      %1037 = vmatprep.subr.mxu0 0.0
      %1038 = vmatpush1.xpose.msra.mxu0 0.0
      %1039 = vmatprep.subr.mxu0 0.0
      %1040 = vmatpush1.xpose.msra.mxu0 0.0
      %1041 = vmatprep.subr.mxu0 0.0
      %1042 = vmatpush1.xpose.msra.mxu0 0.0
      %1043 = vmatprep.subr.mxu0 0.0
      %1044 = vmatpush1.xpose.msra.mxu0 0.0
      %1045 = vmatprep.subr.mxu0 0.0
      %1046 = vmatpush1.xpose.msra.mxu0 0.0
      %1047 = vmatprep.subr.mxu0 0.0
      %1048 = vmatpush1.xpose.msra.mxu0 0.0
      %1049 = vmatprep.subr.mxu0 0.0
      %1050 = vmatpush1.xpose.msra.mxu0 0.0
      %1051 = vmatprep.subr.mxu0 0.0
      %1052 = vmatpush1.xpose.msra.mxu0 0.0
      %1053 = vmatprep.subr.mxu0 0.0
      %1054 = vmatpush1.xpose.msra.mxu0 0.0
      %1055 = vmatprep.subr.mxu0 0.0
      %1056 = vmatpush1.xpose.msra.mxu0 0.0
      %1057 = vmatprep.subr.mxu0 0.0
      %1058 = vmatpush1.xpose.msra.mxu0 0.0
      %1059 = vmatprep.subr.mxu0 0.0
      %1060 = vmatpush1.xpose.msra.mxu0 0.0
      %1061 = vmatprep.subr.mxu0 0.0
      %1062 = vmatpush1.xpose.msra.mxu0 0.0
      %1063 = vmatprep.subr.mxu0 0.0
      %1064 = vmatpush1.xpose.msra.mxu0 0.0
      %1065 = vmatprep.subr.mxu0 0.0
      %1066 = vmatpush1.xpose.msra.mxu0 0.0
      %1067 = vmatprep.subr.mxu0 0.0
      %1068 = vmatpush1.xpose.msra.mxu0 0.0
      %1069 = vmatprep.subr.mxu0 0.0
      %1070 = vmatpush1.xpose.msra.mxu0 0.0
      %1071 = vmatprep.subr.mxu0 0.0
      %1072 = vmatpush1.xpose.msra.mxu0 0.0
      %1073 = vmatprep.subr.mxu0 0.0
      %1074 = vmatpush1.xpose.msra.mxu0 0.0
      %1075 = vmatprep.subr.mxu0 0.0
      %1076 = vmatpush1.xpose.msra.mxu0 0.0
      %1077 = vmatprep.subr.mxu0 0.0
      %1078 = vmatpush1.xpose.msra.mxu0 0.0
      %1079 = vmatprep.subr.mxu0 0.0
      %1080 = vmatpush1.xpose.msra.mxu0 0.0
      %1081 = vmatprep.subr.mxu0 0.0
      %1082 = vmatpush1.xpose.msra.mxu0 0.0
      %1083 = vmatprep.mubr.f32.mxu0 0.0
      %v1084 = vand.u32 %v841, 4294901760
      %v1085 = vsub.f32 %v841, %v1084
      %1086 = vmatmul.mubr.f32.gmra.mrb[0].mxu0 %v1085
      %v1087 = vpop.f32.mrb[0].mxu0
      %v1088 = vadd.f32 %v1008, %v1087
      %v1089 = vpop.f32.mrb[0].mxu0
      %1090 = vmatprep.mubr.f32.mxu0 0.0
      %v1091 = vand.u32 %v844, 4294901760
      %v1092 = vsub.f32 %v844, %v1091
      %1093 = vmatmul.mubr.f32.gmra.mrb[0].mxu0 %v1092
      %v1094 = vpop.f32.mrb[0].mxu0
      %v1095 = vadd.f32 %v1014, %v1094
      %v1096 = vpop.f32.mrb[0].mxu0
      %1097 = vdwg.mxu0
      %1098 = vmatprep.subr.mxu0 0.0
      %v1099 = vand.u32 %v847, 4294901760
      %1100 = vmatpush1.xpose.msra.mxu0 %v1099
      %1101 = vmatprep.subr.mxu0 0.0
      %1102 = vmatpush1.xpose.msra.mxu0 0.0
      %1103 = vmatprep.subr.mxu0 0.0
      %1104 = vmatpush1.xpose.msra.mxu0 0.0
      %1105 = vmatprep.subr.mxu0 0.0
      %1106 = vmatpush1.xpose.msra.mxu0 0.0
      %1107 = vmatprep.subr.mxu0 0.0
      %1108 = vmatpush1.xpose.msra.mxu0 0.0
      %1109 = vmatprep.subr.mxu0 0.0
      %1110 = vmatpush1.xpose.msra.mxu0 0.0
      %1111 = vmatprep.subr.mxu0 0.0
      %1112 = vmatpush1.xpose.msra.mxu0 0.0
      %1113 = vmatprep.subr.mxu0 0.0
      %1114 = vmatpush1.xpose.msra.mxu0 0.0
      %1115 = vmatprep.subr.mxu0 0.0
      %1116 = vmatpush1.xpose.msra.mxu0 0.0
      %1117 = vmatprep.subr.mxu0 0.0
      %1118 = vmatpush1.xpose.msra.mxu0 0.0
      %1119 = vmatprep.subr.mxu0 0.0
      %1120 = vmatpush1.xpose.msra.mxu0 0.0
      %1121 = vmatprep.subr.mxu0 0.0
      %1122 = vmatpush1.xpose.msra.mxu0 0.0
      %1123 = vmatprep.subr.mxu0 0.0
      %1124 = vmatpush1.xpose.msra.mxu0 0.0
      %1125 = vmatprep.subr.mxu0 0.0
      %1126 = vmatpush1.xpose.msra.mxu0 0.0
      %1127 = vmatprep.subr.mxu0 0.0
      %1128 = vmatpush1.xpose.msra.mxu0 0.0
      %1129 = vmatprep.subr.mxu0 0.0
      %1130 = vmatpush1.xpose.msra.mxu0 0.0
      %1131 = vmatprep.subr.mxu0 0.0
      %1132 = vmatpush1.xpose.msra.mxu0 0.0
      %1133 = vmatprep.subr.mxu0 0.0
      %1134 = vmatpush1.xpose.msra.mxu0 0.0
      %1135 = vmatprep.subr.mxu0 0.0
      %1136 = vmatpush1.xpose.msra.mxu0 0.0
      %1137 = vmatprep.subr.mxu0 0.0
      %1138 = vmatpush1.xpose.msra.mxu0 0.0
      %1139 = vmatprep.subr.mxu0 0.0
      %1140 = vmatpush1.xpose.msra.mxu0 0.0
      %1141 = vmatprep.subr.mxu0 0.0
      %1142 = vmatpush1.xpose.msra.mxu0 0.0
      %1143 = vmatprep.subr.mxu0 0.0
      %1144 = vmatpush1.xpose.msra.mxu0 0.0
      %1145 = vmatprep.subr.mxu0 0.0
      %1146 = vmatpush1.xpose.msra.mxu0 0.0
      %1147 = vmatprep.subr.mxu0 0.0
      %1148 = vmatpush1.xpose.msra.mxu0 0.0
      %1149 = vmatprep.subr.mxu0 0.0
      %1150 = vmatpush1.xpose.msra.mxu0 0.0
      %1151 = vmatprep.subr.mxu0 0.0
      %1152 = vmatpush1.xpose.msra.mxu0 0.0
      %1153 = vmatprep.subr.mxu0 0.0
      %1154 = vmatpush1.xpose.msra.mxu0 0.0
      %1155 = vmatprep.subr.mxu0 0.0
      %1156 = vmatpush1.xpose.msra.mxu0 0.0
      %1157 = vmatprep.subr.mxu0 0.0
      %1158 = vmatpush1.xpose.msra.mxu0 0.0
      %1159 = vmatprep.subr.mxu0 0.0
      %1160 = vmatpush1.xpose.msra.mxu0 0.0
      %1161 = vmatprep.subr.mxu0 0.0
      %1162 = vmatpush1.xpose.msra.mxu0 0.0
      %1163 = vmatprep.mubr.f32.mxu0 0.0
      %v1164 = vand.u32 %v841, 4294901760
      %v1165 = vsub.f32 %v841, %v1164
      %v1166 = vand.u32 %v1165, 4294901760
      %1167 = vmatmul.mubr.f32.gmra.mrb[0].mxu0 %v1166
      %v1168 = vpop.f32.mrb[0].mxu0
      %v1169 = vadd.f32 %v1088, %v1168
      %v1170 = vpop.f32.mrb[0].mxu0
      %1171 = vmatprep.mubr.f32.mxu0 0.0
      %v1172 = vand.u32 %v844, 4294901760
      %v1173 = vsub.f32 %v844, %v1172
      %v1174 = vand.u32 %v1173, 4294901760
      %1175 = vmatmul.mubr.f32.gmra.mrb[0].mxu0 %v1174
      %v1176 = vpop.f32.mrb[0].mxu0
      %v1177 = vadd.f32 %v1095, %v1176
      %v1178 = vpop.f32.mrb[0].mxu0
      %1179 = vdwg.mxu0
      %1180 = vmatprep.subr.mxu0 0.0
      %v1181 = vand.u32 %v847, 4294901760
      %v1182 = vsub.f32 %v847, %v1181
      %v1183 = vand.u32 %v1182, 4294901760
      %1184 = vmatpush1.xpose.msra.mxu0 %v1183
      %1185 = vmatprep.subr.mxu0 0.0
      %1186 = vmatpush1.xpose.msra.mxu0 0.0
      %1187 = vmatprep.subr.mxu0 0.0
      %1188 = vmatpush1.xpose.msra.mxu0 0.0
      %1189 = vmatprep.subr.mxu0 0.0
      %1190 = vmatpush1.xpose.msra.mxu0 0.0
      %1191 = vmatprep.subr.mxu0 0.0
      %1192 = vmatpush1.xpose.msra.mxu0 0.0
      %1193 = vmatprep.subr.mxu0 0.0
      %1194 = vmatpush1.xpose.msra.mxu0 0.0
      %1195 = vmatprep.subr.mxu0 0.0
      %1196 = vmatpush1.xpose.msra.mxu0 0.0
      %1197 = vmatprep.subr.mxu0 0.0
      %1198 = vmatpush1.xpose.msra.mxu0 0.0
      %1199 = vmatprep.subr.mxu0 0.0
      %1200 = vmatpush1.xpose.msra.mxu0 0.0
      %1201 = vmatprep.subr.mxu0 0.0
      %1202 = vmatpush1.xpose.msra.mxu0 0.0
      %1203 = vmatprep.subr.mxu0 0.0
      %1204 = vmatpush1.xpose.msra.mxu0 0.0
      %1205 = vmatprep.subr.mxu0 0.0
      %1206 = vmatpush1.xpose.msra.mxu0 0.0
      %1207 = vmatprep.subr.mxu0 0.0
      %1208 = vmatpush1.xpose.msra.mxu0 0.0
      %1209 = vmatprep.subr.mxu0 0.0
      %1210 = vmatpush1.xpose.msra.mxu0 0.0
      %1211 = vmatprep.subr.mxu0 0.0
      %1212 = vmatpush1.xpose.msra.mxu0 0.0
      %1213 = vmatprep.subr.mxu0 0.0
      %1214 = vmatpush1.xpose.msra.mxu0 0.0
      %1215 = vmatprep.subr.mxu0 0.0
      %1216 = vmatpush1.xpose.msra.mxu0 0.0
      %1217 = vmatprep.subr.mxu0 0.0
      %1218 = vmatpush1.xpose.msra.mxu0 0.0
      %1219 = vmatprep.subr.mxu0 0.0
      %1220 = vmatpush1.xpose.msra.mxu0 0.0
      %1221 = vmatprep.subr.mxu0 0.0
      %1222 = vmatpush1.xpose.msra.mxu0 0.0
      %1223 = vmatprep.subr.mxu0 0.0
      %1224 = vmatpush1.xpose.msra.mxu0 0.0
      %1225 = vmatprep.subr.mxu0 0.0
      %1226 = vmatpush1.xpose.msra.mxu0 0.0
      %1227 = vmatprep.subr.mxu0 0.0
      %1228 = vmatpush1.xpose.msra.mxu0 0.0
      %1229 = vmatprep.subr.mxu0 0.0
      %1230 = vmatpush1.xpose.msra.mxu0 0.0
      %1231 = vmatprep.subr.mxu0 0.0
      %1232 = vmatpush1.xpose.msra.mxu0 0.0
      %1233 = vmatprep.subr.mxu0 0.0
      %1234 = vmatpush1.xpose.msra.mxu0 0.0
      %1235 = vmatprep.subr.mxu0 0.0
      %1236 = vmatpush1.xpose.msra.mxu0 0.0
      %1237 = vmatprep.subr.mxu0 0.0
      %1238 = vmatpush1.xpose.msra.mxu0 0.0
      %1239 = vmatprep.subr.mxu0 0.0
      %1240 = vmatpush1.xpose.msra.mxu0 0.0
      %1241 = vmatprep.subr.mxu0 0.0
      %1242 = vmatpush1.xpose.msra.mxu0 0.0
      %1243 = vmatprep.subr.mxu0 0.0
      %1244 = vmatpush1.xpose.msra.mxu0 0.0
      %1245 = vmatprep.subr.mxu0 0.0
      %1246 = vmatpush1.xpose.msra.mxu0 0.0
      %1247 = vmatprep.mubr.f32.mxu0 0.0
      %v1248 = vand.u32 %v841, 4294901760
      %1249 = vmatmul.mubr.f32.gmra.mrb[0].mxu0 %v1248
      %v1250 = vpop.f32.mrb[0].mxu0
      %v1251 = vadd.f32 %v1169, %v1250
      %v1252 = vpop.f32.mrb[0].mxu0
      %1253 = vmatprep.mubr.f32.mxu0 0.0
      %v1254 = vand.u32 %v844, 4294901760
      %1255 = vmatmul.mubr.f32.gmra.mrb[0].mxu0 %v1254
      %v1256 = vpop.f32.mrb[0].mxu0
      %v1257 = vadd.f32 %v1177, %v1256
      %v1258 = vpop.f32.mrb[0].mxu0
      %1259 = vdwg.mxu0
      %1260 = vmatprep.subr.mxu0 0.0
      %v1261 = vand.u32 %v847, 4294901760
      %1262 = vmatpush1.xpose.msra.mxu0 %v1261
      %1263 = vmatprep.subr.mxu0 0.0
      %1264 = vmatpush1.xpose.msra.mxu0 0.0
      %1265 = vmatprep.subr.mxu0 0.0
      %1266 = vmatpush1.xpose.msra.mxu0 0.0
      %1267 = vmatprep.subr.mxu0 0.0
      %1268 = vmatpush1.xpose.msra.mxu0 0.0
      %1269 = vmatprep.subr.mxu0 0.0
      %1270 = vmatpush1.xpose.msra.mxu0 0.0
      %1271 = vmatprep.subr.mxu0 0.0
      %1272 = vmatpush1.xpose.msra.mxu0 0.0
      %1273 = vmatprep.subr.mxu0 0.0
      %1274 = vmatpush1.xpose.msra.mxu0 0.0
      %1275 = vmatprep.subr.mxu0 0.0
      %1276 = vmatpush1.xpose.msra.mxu0 0.0
      %1277 = vmatprep.subr.mxu0 0.0
      %1278 = vmatpush1.xpose.msra.mxu0 0.0
      %1279 = vmatprep.subr.mxu0 0.0
      %1280 = vmatpush1.xpose.msra.mxu0 0.0
      %1281 = vmatprep.subr.mxu0 0.0
      %1282 = vmatpush1.xpose.msra.mxu0 0.0
      %1283 = vmatprep.subr.mxu0 0.0
      %1284 = vmatpush1.xpose.msra.mxu0 0.0
      %1285 = vmatprep.subr.mxu0 0.0
      %1286 = vmatpush1.xpose.msra.mxu0 0.0
      %1287 = vmatprep.subr.mxu0 0.0
      %1288 = vmatpush1.xpose.msra.mxu0 0.0
      %1289 = vmatprep.subr.mxu0 0.0
      %1290 = vmatpush1.xpose.msra.mxu0 0.0
      %1291 = vmatprep.subr.mxu0 0.0
      %1292 = vmatpush1.xpose.msra.mxu0 0.0
      %1293 = vmatprep.subr.mxu0 0.0
      %1294 = vmatpush1.xpose.msra.mxu0 0.0
      %1295 = vmatprep.subr.mxu0 0.0
      %1296 = vmatpush1.xpose.msra.mxu0 0.0
      %1297 = vmatprep.subr.mxu0 0.0
      %1298 = vmatpush1.xpose.msra.mxu0 0.0
      %1299 = vmatprep.subr.mxu0 0.0
      %1300 = vmatpush1.xpose.msra.mxu0 0.0
      %1301 = vmatprep.subr.mxu0 0.0
      %1302 = vmatpush1.xpose.msra.mxu0 0.0
      %1303 = vmatprep.subr.mxu0 0.0
      %1304 = vmatpush1.xpose.msra.mxu0 0.0
      %1305 = vmatprep.subr.mxu0 0.0
      %1306 = vmatpush1.xpose.msra.mxu0 0.0
      %1307 = vmatprep.subr.mxu0 0.0
      %1308 = vmatpush1.xpose.msra.mxu0 0.0
      %1309 = vmatprep.subr.mxu0 0.0
      %1310 = vmatpush1.xpose.msra.mxu0 0.0
      %1311 = vmatprep.subr.mxu0 0.0
      %1312 = vmatpush1.xpose.msra.mxu0 0.0
      %1313 = vmatprep.subr.mxu0 0.0
      %1314 = vmatpush1.xpose.msra.mxu0 0.0
      %1315 = vmatprep.subr.mxu0 0.0
      %1316 = vmatpush1.xpose.msra.mxu0 0.0
      %1317 = vmatprep.subr.mxu0 0.0
      %1318 = vmatpush1.xpose.msra.mxu0 0.0
      %1319 = vmatprep.subr.mxu0 0.0
      %1320 = vmatpush1.xpose.msra.mxu0 0.0
      %1321 = vmatprep.subr.mxu0 0.0
      %1322 = vmatpush1.xpose.msra.mxu0 0.0
      %1323 = vmatprep.subr.mxu0 0.0
      %1324 = vmatpush1.xpose.msra.mxu0 0.0
      %1325 = vmatprep.mubr.f32.mxu0 0.0
      %v1326 = vand.u32 %v841, 4294901760
      %1327 = vmatmul.mubr.f32.gmra.mrb[0].mxu0 %v1326
      %v1328 = vpop.f32.mrb[0].mxu0
      %v1329 = vadd.f32 %v1251, %v1328
      %v1330 = vpop.f32.mrb[0].mxu0
      %1331 = vmatprep.mubr.f32.mxu0 0.0
      %v1332 = vand.u32 %v844, 4294901760
      %1333 = vmatmul.mubr.f32.gmra.mrb[0].mxu0 %v1332
      %v1334 = vpop.f32.mrb[0].mxu0
      %v1335 = vadd.f32 %v1257, %v1334
      %v1336 = vpop.f32.mrb[0].mxu0
      %1337 = vdwg.mxu0
      %v1338 = vld [vmem:[%s4] sm:$0x1]
      %v1340 = vlaneseq
      %v1341 = vshrl.u32 %v1340, 7
      %v1342 = vsub.s32 0, %v1341
      %v1343 = vrot.slane %v1338, %v1342
      %v1345 = vadd.f32 %v1329, %v1343
      %v1346 = vadd.f32 %v1335, %v1343
      %vm1347 = vcmask 23552
      %1348 = vst.msk [vmem:[%s332] sm:$0xff] %vm1347, %v1345
      %1349 = vst.msk [vmem:[%s332 + $0x8] sm:$0xff] %vm1347, %v1346
      %s1350 = smul.u32 2, %s21
      %p1351 = scmp.lt.s32.totalorder %s20, 1
      %s1352 = scalar_select %p1351, %s20, 1
      %p1353 = scmp.lt.s32.totalorder %s1350, 1
      %s1354 = scalar_select %p1353, %s1350, 1
      %s1355 = smul.addr %s1352, 2
      %s1356 = sadd.s32 %s1354, %s1355
      %s1357 = smul.addr %s1356, 8
      %s1358 = scalar_lea.vmem %s5, %s1357
      // Predicated region
      $region41: #{gnn_atomic_lg_final_forward.1} parent=39 // pred_check
        %p1359 = pneg %p177
      $region42: #{gnn_atomic_lg_final_forward.1} parent=39 // pred_check_branch
        %1361 = sbr.rel (%p1359) target = $region44
      $region43: #{gnn_atomic_lg_final_forward.1} parent=39 // pred_region
        %s1362 = smul.u32 2, %s21
      $region44: #{gnn_atomic_lg_final_forward.1} parent=39 // pred_fallthru
        _
    $region40: #{gnn_atomic_lg_final_forward.1} parent=5 // pred_fallthru
      _
    %p1363 = scmp.le.s32.totalorder 2, %s11
    // Predicated region
    $region45: #{gnn_atomic_lg_final_forward.1} parent=5 // pred_check
      %p1364 = pneg %p1363
    $region46: #{gnn_atomic_lg_final_forward.1} parent=5 // pred_check_branch
      %1366 = sbr.rel (%p1364) target = $region48
    $region47: #{gnn_atomic_lg_final_forward.1} parent=5 // pred_region
      %s1367 = ssub.s32 %s11, 2
      // Predicated region
      $region49: #{gnn_atomic_lg_final_forward.1} parent=47 // pred_check
        %p1368 = pneg %p183
      $region50: #{gnn_atomic_lg_final_forward.1} parent=47 // pred_check_branch
        %1370 = sbr.rel (%p1368) target = $region52
      $region51: #{gnn_atomic_lg_final_forward.1} parent=47 // pred_region
        %s1371 = smul.u32 2, %s23
        %p1372 = scmp.lt.s32.totalorder %s22, 1
        %s1373 = scalar_select %p1372, %s22, 1
        %p1374 = scmp.lt.s32.totalorder %s1371, 1
        %s1375 = scalar_select %p1374, %s1371, 1
        %s1376 = smul.addr %s1373, 2
        %s1377 = sadd.s32 %s1375, %s1376
        %s1378 = smul.addr %s1377, 8
        %s1379 = scalar_lea.vmem %s5, %s1378
      $region52: #{gnn_atomic_lg_final_forward.1} parent=47 // pred_fallthru
        _
    $region48: #{gnn_atomic_lg_final_forward.1} parent=5 // pred_fallthru
      _
  $region6: #{gnn_atomic_lg_final_forward.1} parent=0 // loop_footer
    %s15 = sadd.s32 1, %s11
  $region7: #{gnn_atomic_lg_final_forward.1} parent=0 // loop_footer_branch
    %10 = sbr.rel target = $region3
  $region8: #{gnn_atomic_lg_final_forward.1} parent=0 // loop_exit
    _

</llo_original>
